<compile_context>
chip_gen: v7x
topology: tpu7x:2x2x1
jax: 0.10.0
libtpu: 0.0.40
codegen_flags: <defaults>
</compile_context>

<pallas_src>
import functools

import jax
import jax.numpy as jnp
from jax import lax
from jax.experimental import pallas as pl
from jax.experimental.pallas import tpu as pltpu

D = 512              # feature / channel dim (MLP(512, 512) in the module)
TEMPERATURE = 10.0
MAX_TILE_ROWS = 1024  # cap per-input tile at 1024x512 (<=2 MiB f32) -> safe on v5e/v6e/v7x VMEM

KD_MODULES = {'student': dict(modules=['conv9'], channels=[16]),
              'teacher': dict(modules=['conv9'], channels=[16])}


def _round_up(x, m):
    return ((x + m - 1) // m) * m


def _diffden_kernel(sf_ref, tf_ref, w1_ref, b1_ref, w2_ref, b2_ref, partial_ref,
                    *, tb, b_real, mask_rows):
    # ---- align_layer (MLP): Linear -> ReLU -> Linear on the MXU (bf16 in, f32 accum) ----
    h = jnp.dot(sf_ref[...], w1_ref[...],
                preferred_element_type=jnp.float32) + b1_ref[...]
    h = jnp.maximum(h, 0.0)
    aligned = jnp.dot(h.astype(jnp.bfloat16), w2_ref[...],
                      preferred_element_type=jnp.float32) + b2_ref[...]

    # ---- CriterionKD: KLDiv(log_softmax(pred/T), softmax(soft/T)).sum(-1) per row ----
    inv_t = jnp.float32(1.0 / TEMPERATURE)
    p = aligned * inv_t                                   # pred / T
    s = tf_ref[...].astype(jnp.float32) * inv_t           # soft / T

    # student log-softmax over channel dim (last dim == PyTorch dim=1 for 2-D features)
    p_shift = p - jnp.max(p, axis=-1, keepdims=True)
    p_logsm = p_shift - jnp.log(jnp.sum(jnp.exp(p_shift), axis=-1, keepdims=True))

    # teacher log-softmax computed directly (stable; no reciprocal / masking needed)
    s_shift = s - jnp.max(s, axis=-1, keepdims=True)
    s_logsm = s_shift - jnp.log(jnp.sum(jnp.exp(s_shift), axis=-1, keepdims=True))
    s_sm = jnp.exp(s_logsm)

    # KLDivLoss (reduce=False): target * (log(target) - input)
    kl = s_sm * (s_logsm - p_logsm)                       # (TB, D)

    if mask_rows:  # zero out zero-padded rows beyond the real batch
        row = pl.program_id(0) * tb + lax.broadcasted_iota(jnp.int32, (tb, 1), 0)
        kl = jnp.where(row < b_real, kl, 0.0)

    # Lane-dense per-tile partial: sum over rows only (keep the 512-lane column axis);
    # the final sum(-1) + mean over batch happens in the wrapper.
    partial_ref[...] = jnp.sum(kl, axis=0, keepdims=True)[None, :, :]   # (1, 1, D)


def _make_diffden_call(b_real, tb, num_tiles):
    kernel = functools.partial(_diffden_kernel, tb=tb, b_real=b_real,
                               mask_rows=(num_tiles * tb != b_real))
    return pl.pallas_call(
        kernel,
        out_shape=jax.ShapeDtypeStruct((num_tiles, 1, D), jnp.float32),
        grid_spec=pltpu.PrefetchScalarGridSpec(
            num_scalar_prefetch=0,
            grid=(num_tiles,),
            in_specs=[
                pl.BlockSpec((tb, D), lambda i: (i, 0)),   # student feature tile (bf16)
                pl.BlockSpec((tb, D), lambda i: (i, 0)),   # teacher feature tile (f32)
                pl.BlockSpec((D, D), lambda i: (0, 0)),    # w1 (bf16) - resident
                pl.BlockSpec((1, D), lambda i: (0, 0)),    # b1 (f32)  - resident
                pl.BlockSpec((D, D), lambda i: (0, 0)),    # w2 (bf16) - resident
                pl.BlockSpec((1, D), lambda i: (0, 0)),    # b2 (f32)  - resident
            ],
            out_specs=pl.BlockSpec((1, 1, D), lambda i: (i, 0, 0)),
        ),
        compiler_params=pltpu.CompilerParams(
            # Each grid step writes its own output block -> batch axis is truly parallel
            # (lets v7x megacore shard it across both TensorCores).
            dimension_semantics=("parallel",),
            # ~10 MiB actually needed with TB<=1024; 48 MiB keeps headroom and stays
            # below v7x's 64 MiB physical VMEM.
            vmem_limit_bytes=48 * 1024 * 1024,
        ),
    )


@jax.jit
def _module_kd_loss(sf, tf, w1, b1, w2, b2):
    """Per-module fused align_layer + CriterionKD loss. Traced/compiled once per shape."""
    b = sf.shape[0]
    tb = min(MAX_TILE_ROWS, _round_up(b, 8))
    num_tiles = -(-b // tb)
    b_pad = num_tiles * tb

    sf = sf.astype(jnp.bfloat16)           # matmul input only -> halve its HBM traffic
    if b_pad != b:
        pad = ((0, b_pad - b), (0, 0))
        sf = jnp.pad(sf, pad)
        tf = jnp.pad(tf, pad)

    partials = _make_diffden_call(b, tb, num_tiles)(sf, tf, w1, b1, w2, b2)
    # .sum(-1).mean() of the per-row KL == total sum / real batch size
    return jnp.sum(partials) / jnp.float32(b)


class DiffDenCriterionPallas:
    """JAX/Pallas re-implementation of DiffDenCriterion.forward."""

    def __init__(self, key):
        k1, k2 = jax.random.split(key)
        scale = 1.0 / jnp.sqrt(jnp.float32(D))
        # Deterministic synthetic init of the align_layer MLP(512, 512); weights in bf16
        # (native MXU input), biases and all softmax/KL math stay f32.
        self.w1 = (jax.random.normal(k1, (D, D), jnp.float32) * scale).astype(jnp.bfloat16)
        self.b1 = jnp.zeros((1, D), jnp.float32)
        self.w2 = (jax.random.normal(k2, (D, D), jnp.float32) * scale).astype(jnp.bfloat16)
        self.b2 = jnp.zeros((1, D), jnp.float32)
        self.student_modules = KD_MODULES['student']['modules']
        self.teacher_modules = KD_MODULES['teacher']['modules']
        self._iter = 0

    def __call__(self, student_feat, teacher_feat):
        kd_loss = jnp.float32(0.0)
        anm = {}
        for tm, sm, sf, tf in zip(self.teacher_modules, self.student_modules,
                                  student_feat, teacher_feat):
            loss = _module_kd_loss(sf, tf, self.w1, self.b1, self.w2, self.b2)
            # TODO(synk): DiffKD diff_loss / alpha_anm unavailable (class not defined in source)
            diff_loss = jnp.float32(0.0)
            alpha_anm = jnp.float32(0.0)
            kd_loss = kd_loss + diff_loss + loss
            anm[tm] = alpha_anm
        self._iter += 1
        return kd_loss, anm


if __name__ == "__main__":
    key = jax.random.PRNGKey(0)
    k_param, k_sf, k_tf = jax.random.split(key, 3)

    B = 8  # small batch
    student_feat = [jax.random.normal(k_sf, (B, D), jnp.float32)]
    teacher_feat = [jax.random.normal(k_tf, (B, D), jnp.float32)]

    criterion = DiffDenCriterionPallas(k_param)
    kd_loss, anm = criterion(student_feat, teacher_feat)
    kd_loss = jax.block_until_ready(kd_loss)

    # second call hits the jit / pallas_call cache (no retrace, no rebuild)
    kd_loss2, _ = criterion(student_feat, teacher_feat)
    kd_loss2 = jax.block_until_ready(kd_loss2)

    assert kd_loss.shape == () and jnp.isfinite(kd_loss)
    assert jnp.allclose(kd_loss, kd_loss2)
    print("KERNEL_OK")
</pallas_src>

<mosaic_0001>
module attributes {stable_mosaic.version = 11 : i64} {
  func.func @_diffden_kernel(%arg0: i32, %arg1: memref<8x512xbf16, #tpu.memory_space<vmem>>, %arg2: memref<8x512xf32, #tpu.memory_space<vmem>>, %arg3: memref<512x512xbf16, #tpu.memory_space<vmem>>, %arg4: memref<1x512xf32, #tpu.memory_space<vmem>>, %arg5: memref<512x512xbf16, #tpu.memory_space<vmem>>, %arg6: memref<1x512xf32, #tpu.memory_space<vmem>>, %arg7: memref<1x1x512xf32, #tpu.memory_space<vmem>>) attributes {dimension_semantics = [#tpu.dimension_semantics<parallel>], iteration_bounds = array<i64: 1>, scalar_prefetch = 0 : i64, scratch_operands = 0 : i64, tpu.core_type = #tpu.core_type<tc>, window_params = [{transform_indices = @transform_0, window_bounds = array<i64: 8, 512>}, {transform_indices = @transform_1, window_bounds = array<i64: 8, 512>}, {pipeline_mode = #tpu.pipeline_mode<synchronous>, transform_indices = @transform_2, window_bounds = array<i64: 512, 512>}, {pipeline_mode = #tpu.pipeline_mode<synchronous>, transform_indices = @transform_3, window_bounds = array<i64: 1, 512>}, {pipeline_mode = #tpu.pipeline_mode<synchronous>, transform_indices = @transform_4, window_bounds = array<i64: 512, 512>}, {pipeline_mode = #tpu.pipeline_mode<synchronous>, transform_indices = @transform_5, window_bounds = array<i64: 1, 512>}, {transform_indices = @transform_6, window_bounds = array<i64: 1, 1, 512>}]} {
    %c0 = arith.constant 0 : index
    %c0_0 = arith.constant 0 : index
    %0 = vector.load %arg1[%c0, %c0_0] : memref<8x512xbf16, #tpu.memory_space<vmem>>, vector<8x512xbf16>
    %c0_1 = arith.constant 0 : index
    %c0_2 = arith.constant 0 : index
    %1 = vector.load %arg3[%c0_1, %c0_2] : memref<512x512xbf16, #tpu.memory_space<vmem>>, vector<512x512xbf16>
    %cst = arith.constant dense<0.000000e+00> : vector<8x512xf32>
    %2 = tpu.matmul %0, %1, %cst {dimension_numbers = #tpu.dot_dimension_numbers<[1], [0], [0], [1], [0, 0, 1, 1], [], []>} : vector<8x512xbf16>, vector<512x512xbf16>, vector<8x512xf32> -> vector<8x512xf32>
    %c0_3 = arith.constant 0 : index
    %c0_4 = arith.constant 0 : index
    %3 = vector.load %arg4[%c0_3, %c0_4] : memref<1x512xf32, #tpu.memory_space<vmem>>, vector<1x512xf32>
    %4 = vector.broadcast %3 : vector<1x512xf32> to vector<8x512xf32>
    %5 = arith.addf %2, %4 : vector<8x512xf32>
    %cst_5 = arith.constant 0.000000e+00 : f32
    %6 = vector.broadcast %cst_5 : f32 to vector<8x512xf32>
    %7 = arith.maximumf %5, %6 : vector<8x512xf32>
    %8 = arith.truncf %7 : vector<8x512xf32> to vector<8x512xbf16>
    %c0_6 = arith.constant 0 : index
    %c0_7 = arith.constant 0 : index
    %9 = vector.load %arg5[%c0_6, %c0_7] : memref<512x512xbf16, #tpu.memory_space<vmem>>, vector<512x512xbf16>
    %cst_8 = arith.constant dense<0.000000e+00> : vector<8x512xf32>
    %10 = tpu.matmul %8, %9, %cst_8 {dimension_numbers = #tpu.dot_dimension_numbers<[1], [0], [0], [1], [0, 0, 1, 1], [], []>} : vector<8x512xbf16>, vector<512x512xbf16>, vector<8x512xf32> -> vector<8x512xf32>
    %c0_9 = arith.constant 0 : index
    %c0_10 = arith.constant 0 : index
    %11 = vector.load %arg6[%c0_9, %c0_10] : memref<1x512xf32, #tpu.memory_space<vmem>>, vector<1x512xf32>
    %12 = vector.broadcast %11 : vector<1x512xf32> to vector<8x512xf32>
    %13 = arith.addf %10, %12 : vector<8x512xf32>
    %cst_11 = arith.constant 1.000000e-01 : f32
    %14 = vector.broadcast %cst_11 : f32 to vector<8x512xf32>
    %15 = arith.mulf %13, %14 : vector<8x512xf32>
    %c0_12 = arith.constant 0 : index
    %c0_13 = arith.constant 0 : index
    %16 = vector.load %arg2[%c0_12, %c0_13] : memref<8x512xf32, #tpu.memory_space<vmem>>, vector<8x512xf32>
    %cst_14 = arith.constant 1.000000e-01 : f32
    %17 = vector.broadcast %cst_14 : f32 to vector<8x512xf32>
    %18 = arith.mulf %16, %17 : vector<8x512xf32>
    %cst_15 = arith.constant dense<0xFF800000> : vector<8xf32>
    %19 = vector.multi_reduction <maximumf>, %15, %cst_15 [1] : vector<8x512xf32> to vector<8xf32>
    %20 = vector.shape_cast %19 : vector<8xf32> to vector<8x1xf32>
    %21 = vector.broadcast %20 : vector<8x1xf32> to vector<8x512xf32>
    %22 = arith.subf %15, %21 : vector<8x512xf32>
    %23 = math.exp %22 : vector<8x512xf32>
    %cst_16 = arith.constant dense<0.000000e+00> : vector<8xf32>
    %24 = vector.multi_reduction <add>, %23, %cst_16 [1] : vector<8x512xf32> to vector<8xf32>
    %25 = vector.shape_cast %24 : vector<8xf32> to vector<8x1xf32>
    %26 = math.log %25 : vector<8x1xf32>
    %27 = vector.broadcast %26 : vector<8x1xf32> to vector<8x512xf32>
    %28 = arith.subf %22, %27 : vector<8x512xf32>
    %cst_17 = arith.constant dense<0xFF800000> : vector<8xf32>
    %29 = vector.multi_reduction <maximumf>, %18, %cst_17 [1] : vector<8x512xf32> to vector<8xf32>
    %30 = vector.shape_cast %29 : vector<8xf32> to vector<8x1xf32>
    %31 = vector.broadcast %30 : vector<8x1xf32> to vector<8x512xf32>
    %32 = arith.subf %18, %31 : vector<8x512xf32>
    %33 = math.exp %32 : vector<8x512xf32>
    %cst_18 = arith.constant dense<0.000000e+00> : vector<8xf32>
    %34 = vector.multi_reduction <add>, %33, %cst_18 [1] : vector<8x512xf32> to vector<8xf32>
    %35 = vector.shape_cast %34 : vector<8xf32> to vector<8x1xf32>
    %36 = math.log %35 : vector<8x1xf32>
    %37 = vector.broadcast %36 : vector<8x1xf32> to vector<8x512xf32>
    %38 = arith.subf %32, %37 : vector<8x512xf32>
    %39 = math.exp %38 : vector<8x512xf32>
    %40 = arith.subf %38, %28 : vector<8x512xf32>
    %41 = arith.mulf %39, %40 : vector<8x512xf32>
    %cst_19 = arith.constant dense<0.000000e+00> : vector<512xf32>
    %42 = vector.multi_reduction <add>, %41, %cst_19 [0] : vector<8x512xf32> to vector<512xf32>
    %43 = vector.shape_cast %42 : vector<512xf32> to vector<1x512xf32>
    %44 = vector.shape_cast %43 : vector<1x512xf32> to vector<1x1x512xf32>
    %c0_20 = arith.constant 0 : index
    %c0_21 = arith.constant 0 : index
    %c0_22 = arith.constant 0 : index
    %45 = vector.load %arg7[%c0_20, %c0_21, %c0_22] : memref<1x1x512xf32, #tpu.memory_space<vmem>>, vector<1x1x512xf32>
    tpu.vector_store %arg7[%c0_20, %c0_21, %c0_22], %44 {strides = array<i32>} : memref<1x1x512xf32, #tpu.memory_space<vmem>>, vector<1x1x512xf32>,
    return
  }
  func.func @transform_0(%arg0: i32) -> (i32, i32) {
    %c0_i32 = arith.constant 0 : i32
    %c0_i32_0 = arith.constant 0 : i32
    return %arg0, %c0_i32 : i32, i32
  }
  func.func @transform_1(%arg0: i32) -> (i32, i32) {
    %c0_i32 = arith.constant 0 : i32
    %c0_i32_0 = arith.constant 0 : i32
    return %arg0, %c0_i32 : i32, i32
  }
  func.func @transform_2(%arg0: i32) -> (i32, i32) {
    %c0_i32 = arith.constant 0 : i32
    %c0_i32_0 = arith.constant 0 : i32
    %c0_i32_1 = arith.constant 0 : i32
    return %c0_i32, %c0_i32_0 : i32, i32
  }
  func.func @transform_3(%arg0: i32) -> (i32, i32) {
    %c0_i32 = arith.constant 0 : i32
    %c0_i32_0 = arith.constant 0 : i32
    %c0_i32_1 = arith.constant 0 : i32
    return %c0_i32, %c0_i32_0 : i32, i32
  }
  func.func @transform_4(%arg0: i32) -> (i32, i32) {
    %c0_i32 = arith.constant 0 : i32
    %c0_i32_0 = arith.constant 0 : i32
    %c0_i32_1 = arith.constant 0 : i32
    return %c0_i32, %c0_i32_0 : i32, i32
  }
  func.func @transform_5(%arg0: i32) -> (i32, i32) {
    %c0_i32 = arith.constant 0 : i32
    %c0_i32_0 = arith.constant 0 : i32
    %c0_i32_1 = arith.constant 0 : i32
    return %c0_i32, %c0_i32_0 : i32, i32
  }
  func.func @transform_6(%arg0: i32) -> (i32, i32, i32) {
    %c0_i32 = arith.constant 0 : i32
    %c0_i32_0 = arith.constant 0 : i32
    %c0_i32_1 = arith.constant 0 : i32
    return %arg0, %c0_i32, %c0_i32_0 : i32, i32, i32
  }
}

</mosaic_0001>

<llo_original>
// kernel: _module_kd_loss.1
$region0: #{_module_kd_loss.1}
  #allocation0 [shape = 'u32[]', space=smem, size = 0x4, offset = 0x4, fixed_abs, tag = 'smem constant byte address 0x4 - core index']
  #allocation1 [shape = 'u32[144,128]{1,0:T(1,128)}', space=vmem, size = 0x12000, scoped, tag = 'internal scratch']
  %s0 = inlined_call_operand.vmem [shape: bf16[8,512], index: 0, kind: input, shape index: {}]
  %s1 = inlined_call_operand.vmem [shape: f32[8,512], index: 1, kind: input, shape index: {}]
  %s2 = inlined_call_operand.hbm [shape: bf16[512,512], index: 2, kind: input, shape index: {}]
  %s3 = inlined_call_operand.vmem [shape: f32[1,512], index: 3, kind: input, shape index: {}]
  %s4 = inlined_call_operand.hbm [shape: bf16[512,512], index: 4, kind: input, shape index: {}]
  %s5 = inlined_call_operand.vmem [shape: f32[1,512], index: 5, kind: input, shape index: {}]
  %s6 = inlined_call_operand.vmem [shape: f32[1,1,512], index: 6, kind: output, shape index: {}]
  %s7 = sld [smem:[#allocation0]]
  $region42: #{_module_kd_loss.1} parent=0
    _
  %s9 = ssub.s32 1, %s7
  %s10 = scalar_select 0, %s9, %s7
  $region1: #{_module_kd_loss.1} parent=0
    #allocation2 [shape = 'u8[524288]{0}', space=vmem, size = 0x80000, scoped, tag = 'input window, operand 2, single buffered']
    #allocation3 [shape = 's32[1]{0}', space=sflag, size = 0x4, scoped, tag = 'scoped memory for _module_kd_loss.1']
    #allocation4 [shape = 'u8[524288]{0}', space=vmem, size = 0x80000, scoped, tag = 'input window, operand 4, single buffered']
    #allocation5 [shape = 's32[1]{0}', space=sflag, size = 0x4, scoped, tag = 'scoped memory for _module_kd_loss.1']
    %11 = vsyncpa [#allocation3], 0
    %12 = vsyncpa [#allocation5], 0
    // Predicated region
    $region2: #{_module_kd_loss.1} parent=1 // pred_check
      _
    $region3: #{_module_kd_loss.1} parent=1 // pred_check_branch
      %14 = sbr.rel (0) target = $region5
    $region4: #{_module_kd_loss.1} parent=1 // pred_region
      _
    $region5: #{_module_kd_loss.1} parent=1 // pred_fallthru
      _
    // Predicated region
    $region6: #{_module_kd_loss.1} parent=1 // pred_check
      _
    $region7: #{_module_kd_loss.1} parent=1 // pred_check_branch
      %16 = sbr.rel (0) target = $region9
    $region8: #{_module_kd_loss.1} parent=1 // pred_region
      _
    $region9: #{_module_kd_loss.1} parent=1 // pred_fallthru
      _
    // Predicated region
    $region10: #{_module_kd_loss.1} parent=1 // pred_check
      _
    $region11: #{_module_kd_loss.1} parent=1 // pred_check_branch
      %18 = sbr.rel (0) target = $region13
    $region12: #{_module_kd_loss.1} parent=1 // pred_region
      %s20 = ssub.s32 16384, 16384
      %21 = vsyncadd [#allocation3], %s20
      %s22 = sshll.u32 [#allocation2], 4
      %s23 = int_to_ptr.vmem [resolvable:$true] %s22
      %28 = dma.hbm_to_vmem [thread:$0]  %s2, 16384, %s23, [#allocation3], 256, 256, 16
    $region13: #{_module_kd_loss.1} parent=1 // pred_fallthru
      _
    // Predicated region
    $region14: #{_module_kd_loss.1} parent=1 // pred_check
      _
    $region15: #{_module_kd_loss.1} parent=1 // pred_check_branch
      %30 = sbr.rel (0) target = $region17
    $region16: #{_module_kd_loss.1} parent=1 // pred_region
      _
    $region17: #{_module_kd_loss.1} parent=1 // pred_fallthru
      _
    // Predicated region
    $region18: #{_module_kd_loss.1} parent=1 // pred_check
      _
    $region19: #{_module_kd_loss.1} parent=1 // pred_check_branch
      %32 = sbr.rel (0) target = $region21
    $region20: #{_module_kd_loss.1} parent=1 // pred_region
      %s34 = ssub.s32 16384, 16384
      %35 = vsyncadd [#allocation5], %s34
      %s36 = sshll.u32 [#allocation4], 4
      %s37 = int_to_ptr.vmem [resolvable:$true] %s36
      %42 = dma.hbm_to_vmem [thread:$0]  %s4, 16384, %s37, [#allocation5], 256, 256, 16
    $region21: #{_module_kd_loss.1} parent=1 // pred_fallthru
      _
    // Predicated region
    $region22: #{_module_kd_loss.1} parent=1 // pred_check
      _
    $region23: #{_module_kd_loss.1} parent=1 // pred_check_branch
      %44 = sbr.rel (0) target = $region25
    $region24: #{_module_kd_loss.1} parent=1 // pred_region
      _
    $region25: #{_module_kd_loss.1} parent=1 // pred_fallthru
      _
    // Predicated region
    $region26: #{_module_kd_loss.1} parent=1 // pred_check
      _
    $region27: #{_module_kd_loss.1} parent=1 // pred_check_branch
      %46 = sbr.rel (0) target = $region29
    $region28: #{_module_kd_loss.1} parent=1 // pred_region
      %47 = dma.done [#allocation3], 16384
    $region29: #{_module_kd_loss.1} parent=1 // pred_fallthru
      _
    // Predicated region
    $region30: #{_module_kd_loss.1} parent=1 // pred_check
      _
    $region31: #{_module_kd_loss.1} parent=1 // pred_check_branch
      %49 = sbr.rel (0) target = $region33
    $region32: #{_module_kd_loss.1} parent=1 // pred_region
      %50 = dma.done [#allocation5], 16384
    $region33: #{_module_kd_loss.1} parent=1 // pred_fallthru
      _
    %v51 = vld [vmem:[%s0] sm:$0xff]
    %v52 = vld [vmem:[%s0 + $0x8] sm:$0xff]
    %v53 = vld [vmem:[#allocation2] sm:$0xff]
    %v54 = vld [vmem:[#allocation2 + $0x8] sm:$0xff]
    %v55 = vld [vmem:[#allocation2 + $0x10] sm:$0xff]
    %v56 = vld [vmem:[#allocation2 + $0x18] sm:$0xff]
    %v57 = vld [vmem:[#allocation2 + $0x20] sm:$0xff]
    %v58 = vld [vmem:[#allocation2 + $0x28] sm:$0xff]
    %v59 = vld [vmem:[#allocation2 + $0x30] sm:$0xff]
    %v60 = vld [vmem:[#allocation2 + $0x38] sm:$0xff]
    %v61 = vld [vmem:[#allocation2 + $0x40] sm:$0xff]
    %v62 = vld [vmem:[#allocation2 + $0x48] sm:$0xff]
    %v63 = vld [vmem:[#allocation2 + $0x50] sm:$0xff]
    %v64 = vld [vmem:[#allocation2 + $0x58] sm:$0xff]
    %v65 = vld [vmem:[#allocation2 + $0x60] sm:$0xff]
    %v66 = vld [vmem:[#allocation2 + $0x68] sm:$0xff]
    %v67 = vld [vmem:[#allocation2 + $0x70] sm:$0xff]
    %v68 = vld [vmem:[#allocation2 + $0x78] sm:$0xff]
    %v69 = vld [vmem:[#allocation2 + $0x80] sm:$0xff]
    %v70 = vld [vmem:[#allocation2 + $0x88] sm:$0xff]
    %v71 = vld [vmem:[#allocation2 + $0x90] sm:$0xff]
    %v72 = vld [vmem:[#allocation2 + $0x98] sm:$0xff]
    %v73 = vld [vmem:[#allocation2 + $0xa0] sm:$0xff]
    %v74 = vld [vmem:[#allocation2 + $0xa8] sm:$0xff]
    %v75 = vld [vmem:[#allocation2 + $0xb0] sm:$0xff]
    %v76 = vld [vmem:[#allocation2 + $0xb8] sm:$0xff]
    %v77 = vld [vmem:[#allocation2 + $0xc0] sm:$0xff]
    %v78 = vld [vmem:[#allocation2 + $0xc8] sm:$0xff]
    %v79 = vld [vmem:[#allocation2 + $0xd0] sm:$0xff]
    %v80 = vld [vmem:[#allocation2 + $0xd8] sm:$0xff]
    %v81 = vld [vmem:[#allocation2 + $0xe0] sm:$0xff]
    %v82 = vld [vmem:[#allocation2 + $0xe8] sm:$0xff]
    %v83 = vld [vmem:[#allocation2 + $0xf0] sm:$0xff]
    %v84 = vld [vmem:[#allocation2 + $0xf8] sm:$0xff]
    %v85 = vld [vmem:[#allocation2 + $0x100] sm:$0xff]
    %v86 = vld [vmem:[#allocation2 + $0x108] sm:$0xff]
    %v87 = vld [vmem:[#allocation2 + $0x110] sm:$0xff]
    %v88 = vld [vmem:[#allocation2 + $0x118] sm:$0xff]
    %v89 = vld [vmem:[#allocation2 + $0x120] sm:$0xff]
    %v90 = vld [vmem:[#allocation2 + $0x128] sm:$0xff]
    %v91 = vld [vmem:[#allocation2 + $0x130] sm:$0xff]
    %v92 = vld [vmem:[#allocation2 + $0x138] sm:$0xff]
    %v93 = vld [vmem:[#allocation2 + $0x140] sm:$0xff]
    %v94 = vld [vmem:[#allocation2 + $0x148] sm:$0xff]
    %v95 = vld [vmem:[#allocation2 + $0x150] sm:$0xff]
    %v96 = vld [vmem:[#allocation2 + $0x158] sm:$0xff]
    %v97 = vld [vmem:[#allocation2 + $0x160] sm:$0xff]
    %v98 = vld [vmem:[#allocation2 + $0x168] sm:$0xff]
    %v99 = vld [vmem:[#allocation2 + $0x170] sm:$0xff]
    %v100 = vld [vmem:[#allocation2 + $0x178] sm:$0xff]
    %v101 = vld [vmem:[#allocation2 + $0x180] sm:$0xff]
    %v102 = vld [vmem:[#allocation2 + $0x188] sm:$0xff]
    %v103 = vld [vmem:[#allocation2 + $0x190] sm:$0xff]
    %v104 = vld [vmem:[#allocation2 + $0x198] sm:$0xff]
    %v105 = vld [vmem:[#allocation2 + $0x1a0] sm:$0xff]
    %v106 = vld [vmem:[#allocation2 + $0x1a8] sm:$0xff]
    %v107 = vld [vmem:[#allocation2 + $0x1b0] sm:$0xff]
    %v108 = vld [vmem:[#allocation2 + $0x1b8] sm:$0xff]
    %v109 = vld [vmem:[#allocation2 + $0x1c0] sm:$0xff]
    %v110 = vld [vmem:[#allocation2 + $0x1c8] sm:$0xff]
    %v111 = vld [vmem:[#allocation2 + $0x1d0] sm:$0xff]
    %v112 = vld [vmem:[#allocation2 + $0x1d8] sm:$0xff]
    %v113 = vld [vmem:[#allocation2 + $0x1e0] sm:$0xff]
    %v114 = vld [vmem:[#allocation2 + $0x1e8] sm:$0xff]
    %v115 = vld [vmem:[#allocation2 + $0x1f0] sm:$0xff]
    %v116 = vld [vmem:[#allocation2 + $0x1f8] sm:$0xff]
    %v117 = vld [vmem:[#allocation2 + $0x200] sm:$0xff]
    %v118 = vld [vmem:[#allocation2 + $0x208] sm:$0xff]
    %v119 = vld [vmem:[#allocation2 + $0x210] sm:$0xff]
    %v120 = vld [vmem:[#allocation2 + $0x218] sm:$0xff]
    %v121 = vld [vmem:[#allocation2 + $0x220] sm:$0xff]
    %v122 = vld [vmem:[#allocation2 + $0x228] sm:$0xff]
    %v123 = vld [vmem:[#allocation2 + $0x230] sm:$0xff]
    %v124 = vld [vmem:[#allocation2 + $0x238] sm:$0xff]
    %v125 = vld [vmem:[#allocation2 + $0x240] sm:$0xff]
    %v126 = vld [vmem:[#allocation2 + $0x248] sm:$0xff]
    %v127 = vld [vmem:[#allocation2 + $0x250] sm:$0xff]
    %v128 = vld [vmem:[#allocation2 + $0x258] sm:$0xff]
    %v129 = vld [vmem:[#allocation2 + $0x260] sm:$0xff]
    %v130 = vld [vmem:[#allocation2 + $0x268] sm:$0xff]
    %v131 = vld [vmem:[#allocation2 + $0x270] sm:$0xff]
    %v132 = vld [vmem:[#allocation2 + $0x278] sm:$0xff]
    %v133 = vld [vmem:[#allocation2 + $0x280] sm:$0xff]
    %v134 = vld [vmem:[#allocation2 + $0x288] sm:$0xff]
    %v135 = vld [vmem:[#allocation2 + $0x290] sm:$0xff]
    %v136 = vld [vmem:[#allocation2 + $0x298] sm:$0xff]
    %v137 = vld [vmem:[#allocation2 + $0x2a0] sm:$0xff]
    %v138 = vld [vmem:[#allocation2 + $0x2a8] sm:$0xff]
    %v139 = vld [vmem:[#allocation2 + $0x2b0] sm:$0xff]
    %v140 = vld [vmem:[#allocation2 + $0x2b8] sm:$0xff]
    %v141 = vld [vmem:[#allocation2 + $0x2c0] sm:$0xff]
    %v142 = vld [vmem:[#allocation2 + $0x2c8] sm:$0xff]
    %v143 = vld [vmem:[#allocation2 + $0x2d0] sm:$0xff]
    %v144 = vld [vmem:[#allocation2 + $0x2d8] sm:$0xff]
    %v145 = vld [vmem:[#allocation2 + $0x2e0] sm:$0xff]
    %v146 = vld [vmem:[#allocation2 + $0x2e8] sm:$0xff]
    %v147 = vld [vmem:[#allocation2 + $0x2f0] sm:$0xff]
    %v148 = vld [vmem:[#allocation2 + $0x2f8] sm:$0xff]
    %v149 = vld [vmem:[#allocation2 + $0x300] sm:$0xff]
    %v150 = vld [vmem:[#allocation2 + $0x308] sm:$0xff]
    %v151 = vld [vmem:[#allocation2 + $0x310] sm:$0xff]
    %v152 = vld [vmem:[#allocation2 + $0x318] sm:$0xff]
    %v153 = vld [vmem:[#allocation2 + $0x320] sm:$0xff]
    %v154 = vld [vmem:[#allocation2 + $0x328] sm:$0xff]
    %v155 = vld [vmem:[#allocation2 + $0x330] sm:$0xff]
    %v156 = vld [vmem:[#allocation2 + $0x338] sm:$0xff]
    %v157 = vld [vmem:[#allocation2 + $0x340] sm:$0xff]
    %v158 = vld [vmem:[#allocation2 + $0x348] sm:$0xff]
    %v159 = vld [vmem:[#allocation2 + $0x350] sm:$0xff]
    %v160 = vld [vmem:[#allocation2 + $0x358] sm:$0xff]
    %v161 = vld [vmem:[#allocation2 + $0x360] sm:$0xff]
    %v162 = vld [vmem:[#allocation2 + $0x368] sm:$0xff]
    %v163 = vld [vmem:[#allocation2 + $0x370] sm:$0xff]
    %v164 = vld [vmem:[#allocation2 + $0x378] sm:$0xff]
    %v165 = vld [vmem:[#allocation2 + $0x380] sm:$0xff]
    %v166 = vld [vmem:[#allocation2 + $0x388] sm:$0xff]
    %v167 = vld [vmem:[#allocation2 + $0x390] sm:$0xff]
    %v168 = vld [vmem:[#allocation2 + $0x398] sm:$0xff]
    %v169 = vld [vmem:[#allocation2 + $0x3a0] sm:$0xff]
    %v170 = vld [vmem:[#allocation2 + $0x3a8] sm:$0xff]
    %v171 = vld [vmem:[#allocation2 + $0x3b0] sm:$0xff]
    %v172 = vld [vmem:[#allocation2 + $0x3b8] sm:$0xff]
    %v173 = vld [vmem:[#allocation2 + $0x3c0] sm:$0xff]
    %v174 = vld [vmem:[#allocation2 + $0x3c8] sm:$0xff]
    %v175 = vld [vmem:[#allocation2 + $0x3d0] sm:$0xff]
    %v176 = vld [vmem:[#allocation2 + $0x3d8] sm:$0xff]
    %v177 = vld [vmem:[#allocation2 + $0x3e0] sm:$0xff]
    %v178 = vld [vmem:[#allocation2 + $0x3e8] sm:$0xff]
    %v179 = vld [vmem:[#allocation2 + $0x3f0] sm:$0xff]
    %v180 = vld [vmem:[#allocation2 + $0x3f8] sm:$0xff]
    %v181 = vld [vmem:[%s3] sm:$0xf]
    %v183 = vlaneseq
    %v184 = vshrl.u32 %v183, 7
    %v185 = vsub.s32 0, %v184
    %v186 = vrot.slane %v181, %v185
    %v187 = vlaneseq
    %v188 = vshrl.u32 %v187, 7
    %v189 = vsub.s32 1, %v188
    %v190 = vrot.slane %v181, %v189
    %v191 = vlaneseq
    %v192 = vshrl.u32 %v191, 7
    %v193 = vsub.s32 2, %v192
    %v194 = vrot.slane %v181, %v193
    %v195 = vlaneseq
    %v196 = vshrl.u32 %v195, 7
    %v197 = vsub.s32 3, %v196
    %v198 = vrot.slane %v181, %v197
    %v205 = vunpack.c.l.b16 %v51
    %v206 = vunpack.c.h.b16 %v51
    %v207 = vunpack.c.l.b16 %v52
    %v208 = vunpack.c.h.b16 %v52
    %v209 = vpack.c.b16 %v205, %v205
    %v210 = vpack.c.b16 %v206, %v206
    %v211 = vpack.c.b16 %v207, %v207
    %v212 = vpack.c.b16 %v208, %v208
    %v345 = vunpack.c.l.b16 %v53
    %v346 = vunpack.c.h.b16 %v53
    %v347 = vunpack.c.l.b16 %v54
    %v348 = vunpack.c.h.b16 %v54
    %v349 = vunpack.c.l.b16 %v55
    %v350 = vunpack.c.h.b16 %v55
    %v351 = vunpack.c.l.b16 %v56
    %v352 = vunpack.c.h.b16 %v56
    %v353 = vunpack.c.l.b16 %v57
    %v354 = vunpack.c.h.b16 %v57
    %v355 = vunpack.c.l.b16 %v58
    %v356 = vunpack.c.h.b16 %v58
    %v357 = vunpack.c.l.b16 %v59
    %v358 = vunpack.c.h.b16 %v59
    %v359 = vunpack.c.l.b16 %v60
    %v360 = vunpack.c.h.b16 %v60
    %v361 = vunpack.c.l.b16 %v61
    %v362 = vunpack.c.h.b16 %v61
    %v363 = vunpack.c.l.b16 %v62
    %v364 = vunpack.c.h.b16 %v62
    %v365 = vunpack.c.l.b16 %v63
    %v366 = vunpack.c.h.b16 %v63
    %v367 = vunpack.c.l.b16 %v64
    %v368 = vunpack.c.h.b16 %v64
    %v369 = vunpack.c.l.b16 %v65
    %v370 = vunpack.c.h.b16 %v65
    %v371 = vunpack.c.l.b16 %v66
    %v372 = vunpack.c.h.b16 %v66
    %v373 = vunpack.c.l.b16 %v67
    %v374 = vunpack.c.h.b16 %v67
    %v375 = vunpack.c.l.b16 %v68
    %v376 = vunpack.c.h.b16 %v68
    %v377 = vunpack.c.l.b16 %v69
    %v378 = vunpack.c.h.b16 %v69
    %v379 = vunpack.c.l.b16 %v70
    %v380 = vunpack.c.h.b16 %v70
    %v381 = vunpack.c.l.b16 %v71
    %v382 = vunpack.c.h.b16 %v71
    %v383 = vunpack.c.l.b16 %v72
    %v384 = vunpack.c.h.b16 %v72
    %v385 = vunpack.c.l.b16 %v73
    %v386 = vunpack.c.h.b16 %v73
    %v387 = vunpack.c.l.b16 %v74
    %v388 = vunpack.c.h.b16 %v74
    %v389 = vunpack.c.l.b16 %v75
    %v390 = vunpack.c.h.b16 %v75
    %v391 = vunpack.c.l.b16 %v76
    %v392 = vunpack.c.h.b16 %v76
    %v393 = vunpack.c.l.b16 %v77
    %v394 = vunpack.c.h.b16 %v77
    %v395 = vunpack.c.l.b16 %v78
    %v396 = vunpack.c.h.b16 %v78
    %v397 = vunpack.c.l.b16 %v79
    %v398 = vunpack.c.h.b16 %v79
    %v399 = vunpack.c.l.b16 %v80
    %v400 = vunpack.c.h.b16 %v80
    %v401 = vunpack.c.l.b16 %v81
    %v402 = vunpack.c.h.b16 %v81
    %v403 = vunpack.c.l.b16 %v82
    %v404 = vunpack.c.h.b16 %v82
    %v405 = vunpack.c.l.b16 %v83
    %v406 = vunpack.c.h.b16 %v83
    %v407 = vunpack.c.l.b16 %v84
    %v408 = vunpack.c.h.b16 %v84
    %v409 = vunpack.c.l.b16 %v85
    %v410 = vunpack.c.h.b16 %v85
    %v411 = vunpack.c.l.b16 %v86
    %v412 = vunpack.c.h.b16 %v86
    %v413 = vunpack.c.l.b16 %v87
    %v414 = vunpack.c.h.b16 %v87
    %v415 = vunpack.c.l.b16 %v88
    %v416 = vunpack.c.h.b16 %v88
    %v417 = vunpack.c.l.b16 %v89
    %v418 = vunpack.c.h.b16 %v89
    %v419 = vunpack.c.l.b16 %v90
    %v420 = vunpack.c.h.b16 %v90
    %v421 = vunpack.c.l.b16 %v91
    %v422 = vunpack.c.h.b16 %v91
    %v423 = vunpack.c.l.b16 %v92
    %v424 = vunpack.c.h.b16 %v92
    %v425 = vunpack.c.l.b16 %v93
    %v426 = vunpack.c.h.b16 %v93
    %v427 = vunpack.c.l.b16 %v94
    %v428 = vunpack.c.h.b16 %v94
    %v429 = vunpack.c.l.b16 %v95
    %v430 = vunpack.c.h.b16 %v95
    %v431 = vunpack.c.l.b16 %v96
    %v432 = vunpack.c.h.b16 %v96
    %v433 = vunpack.c.l.b16 %v97
    %v434 = vunpack.c.h.b16 %v97
    %v435 = vunpack.c.l.b16 %v98
    %v436 = vunpack.c.h.b16 %v98
    %v437 = vunpack.c.l.b16 %v99
    %v438 = vunpack.c.h.b16 %v99
    %v439 = vunpack.c.l.b16 %v100
    %v440 = vunpack.c.h.b16 %v100
    %v441 = vunpack.c.l.b16 %v101
    %v442 = vunpack.c.h.b16 %v101
    %v443 = vunpack.c.l.b16 %v102
    %v444 = vunpack.c.h.b16 %v102
    %v445 = vunpack.c.l.b16 %v103
    %v446 = vunpack.c.h.b16 %v103
    %v447 = vunpack.c.l.b16 %v104
    %v448 = vunpack.c.h.b16 %v104
    %v449 = vunpack.c.l.b16 %v105
    %v450 = vunpack.c.h.b16 %v105
    %v451 = vunpack.c.l.b16 %v106
    %v452 = vunpack.c.h.b16 %v106
    %v453 = vunpack.c.l.b16 %v107
    %v454 = vunpack.c.h.b16 %v107
    %v455 = vunpack.c.l.b16 %v108
    %v456 = vunpack.c.h.b16 %v108
    %v457 = vunpack.c.l.b16 %v109
    %v458 = vunpack.c.h.b16 %v109
    %v459 = vunpack.c.l.b16 %v110
    %v460 = vunpack.c.h.b16 %v110
    %v461 = vunpack.c.l.b16 %v111
    %v462 = vunpack.c.h.b16 %v111
    %v463 = vunpack.c.l.b16 %v112
    %v464 = vunpack.c.h.b16 %v112
    %v465 = vunpack.c.l.b16 %v113
    %v466 = vunpack.c.h.b16 %v113
    %v467 = vunpack.c.l.b16 %v114
    %v468 = vunpack.c.h.b16 %v114
    %v469 = vunpack.c.l.b16 %v115
    %v470 = vunpack.c.h.b16 %v115
    %v471 = vunpack.c.l.b16 %v116
    %v472 = vunpack.c.h.b16 %v116
    %v473 = vunpack.c.l.b16 %v117
    %v474 = vunpack.c.h.b16 %v117
    %v475 = vunpack.c.l.b16 %v118
    %v476 = vunpack.c.h.b16 %v118
    %v477 = vunpack.c.l.b16 %v119
    %v478 = vunpack.c.h.b16 %v119
    %v479 = vunpack.c.l.b16 %v120
    %v480 = vunpack.c.h.b16 %v120
    %v481 = vunpack.c.l.b16 %v121
    %v482 = vunpack.c.h.b16 %v121
    %v483 = vunpack.c.l.b16 %v122
    %v484 = vunpack.c.h.b16 %v122
    %v485 = vunpack.c.l.b16 %v123
    %v486 = vunpack.c.h.b16 %v123
    %v487 = vunpack.c.l.b16 %v124
    %v488 = vunpack.c.h.b16 %v124
    %v489 = vunpack.c.l.b16 %v125
    %v490 = vunpack.c.h.b16 %v125
    %v491 = vunpack.c.l.b16 %v126
    %v492 = vunpack.c.h.b16 %v126
    %v493 = vunpack.c.l.b16 %v127
    %v494 = vunpack.c.h.b16 %v127
    %v495 = vunpack.c.l.b16 %v128
    %v496 = vunpack.c.h.b16 %v128
    %v497 = vunpack.c.l.b16 %v129
    %v498 = vunpack.c.h.b16 %v129
    %v499 = vunpack.c.l.b16 %v130
    %v500 = vunpack.c.h.b16 %v130
    %v501 = vunpack.c.l.b16 %v131
    %v502 = vunpack.c.h.b16 %v131
    %v503 = vunpack.c.l.b16 %v132
    %v504 = vunpack.c.h.b16 %v132
    %v505 = vunpack.c.l.b16 %v133
    %v506 = vunpack.c.h.b16 %v133
    %v507 = vunpack.c.l.b16 %v134
    %v508 = vunpack.c.h.b16 %v134
    %v509 = vunpack.c.l.b16 %v135
    %v510 = vunpack.c.h.b16 %v135
    %v511 = vunpack.c.l.b16 %v136
    %v512 = vunpack.c.h.b16 %v136
    %v513 = vunpack.c.l.b16 %v137
    %v514 = vunpack.c.h.b16 %v137
    %v515 = vunpack.c.l.b16 %v138
    %v516 = vunpack.c.h.b16 %v138
    %v517 = vunpack.c.l.b16 %v139
    %v518 = vunpack.c.h.b16 %v139
    %v519 = vunpack.c.l.b16 %v140
    %v520 = vunpack.c.h.b16 %v140
    %v521 = vunpack.c.l.b16 %v141
    %v522 = vunpack.c.h.b16 %v141
    %v523 = vunpack.c.l.b16 %v142
    %v524 = vunpack.c.h.b16 %v142
    %v525 = vunpack.c.l.b16 %v143
    %v526 = vunpack.c.h.b16 %v143
    %v527 = vunpack.c.l.b16 %v144
    %v528 = vunpack.c.h.b16 %v144
    %v529 = vunpack.c.l.b16 %v145
    %v530 = vunpack.c.h.b16 %v145
    %v531 = vunpack.c.l.b16 %v146
    %v532 = vunpack.c.h.b16 %v146
    %v533 = vunpack.c.l.b16 %v147
    %v534 = vunpack.c.h.b16 %v147
    %v535 = vunpack.c.l.b16 %v148
    %v536 = vunpack.c.h.b16 %v148
    %v537 = vunpack.c.l.b16 %v149
    %v538 = vunpack.c.h.b16 %v149
    %v539 = vunpack.c.l.b16 %v150
    %v540 = vunpack.c.h.b16 %v150
    %v541 = vunpack.c.l.b16 %v151
    %v542 = vunpack.c.h.b16 %v151
    %v543 = vunpack.c.l.b16 %v152
    %v544 = vunpack.c.h.b16 %v152
    %v545 = vunpack.c.l.b16 %v153
    %v546 = vunpack.c.h.b16 %v153
    %v547 = vunpack.c.l.b16 %v154
    %v548 = vunpack.c.h.b16 %v154
    %v549 = vunpack.c.l.b16 %v155
    %v550 = vunpack.c.h.b16 %v155
    %v551 = vunpack.c.l.b16 %v156
    %v552 = vunpack.c.h.b16 %v156
    %v553 = vunpack.c.l.b16 %v157
    %v554 = vunpack.c.h.b16 %v157
    %v555 = vunpack.c.l.b16 %v158
    %v556 = vunpack.c.h.b16 %v158
    %v557 = vunpack.c.l.b16 %v159
    %v558 = vunpack.c.h.b16 %v159
    %v559 = vunpack.c.l.b16 %v160
    %v560 = vunpack.c.h.b16 %v160
    %v561 = vunpack.c.l.b16 %v161
    %v562 = vunpack.c.h.b16 %v161
    %v563 = vunpack.c.l.b16 %v162
    %v564 = vunpack.c.h.b16 %v162
    %v565 = vunpack.c.l.b16 %v163
    %v566 = vunpack.c.h.b16 %v163
    %v567 = vunpack.c.l.b16 %v164
    %v568 = vunpack.c.h.b16 %v164
    %v569 = vunpack.c.l.b16 %v165
    %v570 = vunpack.c.h.b16 %v165
    %v571 = vunpack.c.l.b16 %v166
    %v572 = vunpack.c.h.b16 %v166
    %v573 = vunpack.c.l.b16 %v167
    %v574 = vunpack.c.h.b16 %v167
    %v575 = vunpack.c.l.b16 %v168
    %v576 = vunpack.c.h.b16 %v168
    %v577 = vunpack.c.l.b16 %v169
    %v578 = vunpack.c.h.b16 %v169
    %v579 = vunpack.c.l.b16 %v170
    %v580 = vunpack.c.h.b16 %v170
    %v581 = vunpack.c.l.b16 %v171
    %v582 = vunpack.c.h.b16 %v171
    %v583 = vunpack.c.l.b16 %v172
    %v584 = vunpack.c.h.b16 %v172
    %v585 = vunpack.c.l.b16 %v173
    %v586 = vunpack.c.h.b16 %v173
    %v587 = vunpack.c.l.b16 %v174
    %v588 = vunpack.c.h.b16 %v174
    %v589 = vunpack.c.l.b16 %v175
    %v590 = vunpack.c.h.b16 %v175
    %v591 = vunpack.c.l.b16 %v176
    %v592 = vunpack.c.h.b16 %v176
    %v593 = vunpack.c.l.b16 %v177
    %v594 = vunpack.c.h.b16 %v177
    %v595 = vunpack.c.l.b16 %v178
    %v596 = vunpack.c.h.b16 %v178
    %v597 = vunpack.c.l.b16 %v179
    %v598 = vunpack.c.h.b16 %v179
    %v599 = vunpack.c.l.b16 %v180
    %v600 = vunpack.c.h.b16 %v180
    %v601 = vpack.c.b16 %v349, %v345
    %v602 = vpack.c.b16 %v350, %v346
    %v603 = vpack.c.b16 %v351, %v347
    %v604 = vpack.c.b16 %v352, %v348
    %v605 = vpack.c.b16 %v357, %v353
    %v606 = vpack.c.b16 %v358, %v354
    %v607 = vpack.c.b16 %v359, %v355
    %v608 = vpack.c.b16 %v360, %v356
    %v609 = vpack.c.b16 %v365, %v361
    %v610 = vpack.c.b16 %v366, %v362
    %v611 = vpack.c.b16 %v367, %v363
    %v612 = vpack.c.b16 %v368, %v364
    %v613 = vpack.c.b16 %v373, %v369
    %v614 = vpack.c.b16 %v374, %v370
    %v615 = vpack.c.b16 %v375, %v371
    %v616 = vpack.c.b16 %v376, %v372
    %v617 = vpack.c.b16 %v381, %v377
    %v618 = vpack.c.b16 %v382, %v378
    %v619 = vpack.c.b16 %v383, %v379
    %v620 = vpack.c.b16 %v384, %v380
    %v621 = vpack.c.b16 %v389, %v385
    %v622 = vpack.c.b16 %v390, %v386
    %v623 = vpack.c.b16 %v391, %v387
    %v624 = vpack.c.b16 %v392, %v388
    %v625 = vpack.c.b16 %v397, %v393
    %v626 = vpack.c.b16 %v398, %v394
    %v627 = vpack.c.b16 %v399, %v395
    %v628 = vpack.c.b16 %v400, %v396
    %v629 = vpack.c.b16 %v405, %v401
    %v630 = vpack.c.b16 %v406, %v402
    %v631 = vpack.c.b16 %v407, %v403
    %v632 = vpack.c.b16 %v408, %v404
    %v633 = vpack.c.b16 %v413, %v409
    %v634 = vpack.c.b16 %v414, %v410
    %v635 = vpack.c.b16 %v415, %v411
    %v636 = vpack.c.b16 %v416, %v412
    %v637 = vpack.c.b16 %v421, %v417
    %v638 = vpack.c.b16 %v422, %v418
    %v639 = vpack.c.b16 %v423, %v419
    %v640 = vpack.c.b16 %v424, %v420
    %v641 = vpack.c.b16 %v429, %v425
    %v642 = vpack.c.b16 %v430, %v426
    %v643 = vpack.c.b16 %v431, %v427
    %v644 = vpack.c.b16 %v432, %v428
    %v645 = vpack.c.b16 %v437, %v433
    %v646 = vpack.c.b16 %v438, %v434
    %v647 = vpack.c.b16 %v439, %v435
    %v648 = vpack.c.b16 %v440, %v436
    %v649 = vpack.c.b16 %v445, %v441
    %v650 = vpack.c.b16 %v446, %v442
    %v651 = vpack.c.b16 %v447, %v443
    %v652 = vpack.c.b16 %v448, %v444
    %v653 = vpack.c.b16 %v453, %v449
    %v654 = vpack.c.b16 %v454, %v450
    %v655 = vpack.c.b16 %v455, %v451
    %v656 = vpack.c.b16 %v456, %v452
    %v657 = vpack.c.b16 %v461, %v457
    %v658 = vpack.c.b16 %v462, %v458
    %v659 = vpack.c.b16 %v463, %v459
    %v660 = vpack.c.b16 %v464, %v460
    %v661 = vpack.c.b16 %v469, %v465
    %v662 = vpack.c.b16 %v470, %v466
    %v663 = vpack.c.b16 %v471, %v467
    %v664 = vpack.c.b16 %v472, %v468
    %v665 = vpack.c.b16 %v477, %v473
    %v666 = vpack.c.b16 %v478, %v474
    %v667 = vpack.c.b16 %v479, %v475
    %v668 = vpack.c.b16 %v480, %v476
    %v669 = vpack.c.b16 %v485, %v481
    %v670 = vpack.c.b16 %v486, %v482
    %v671 = vpack.c.b16 %v487, %v483
    %v672 = vpack.c.b16 %v488, %v484
    %v673 = vpack.c.b16 %v493, %v489
    %v674 = vpack.c.b16 %v494, %v490
    %v675 = vpack.c.b16 %v495, %v491
    %v676 = vpack.c.b16 %v496, %v492
    %v677 = vpack.c.b16 %v501, %v497
    %v678 = vpack.c.b16 %v502, %v498
    %v679 = vpack.c.b16 %v503, %v499
    %v680 = vpack.c.b16 %v504, %v500
    %v681 = vpack.c.b16 %v509, %v505
    %v682 = vpack.c.b16 %v510, %v506
    %v683 = vpack.c.b16 %v511, %v507
    %v684 = vpack.c.b16 %v512, %v508
    %v685 = vpack.c.b16 %v517, %v513
    %v686 = vpack.c.b16 %v518, %v514
    %v687 = vpack.c.b16 %v519, %v515
    %v688 = vpack.c.b16 %v520, %v516
    %v689 = vpack.c.b16 %v525, %v521
    %v690 = vpack.c.b16 %v526, %v522
    %v691 = vpack.c.b16 %v527, %v523
    %v692 = vpack.c.b16 %v528, %v524
    %v693 = vpack.c.b16 %v533, %v529
    %v694 = vpack.c.b16 %v534, %v530
    %v695 = vpack.c.b16 %v535, %v531
    %v696 = vpack.c.b16 %v536, %v532
    %v697 = vpack.c.b16 %v541, %v537
    %v698 = vpack.c.b16 %v542, %v538
    %v699 = vpack.c.b16 %v543, %v539
    %v700 = vpack.c.b16 %v544, %v540
    %v701 = vpack.c.b16 %v549, %v545
    %v702 = vpack.c.b16 %v550, %v546
    %v703 = vpack.c.b16 %v551, %v547
    %v704 = vpack.c.b16 %v552, %v548
    %v705 = vpack.c.b16 %v557, %v553
    %v706 = vpack.c.b16 %v558, %v554
    %v707 = vpack.c.b16 %v559, %v555
    %v708 = vpack.c.b16 %v560, %v556
    %v709 = vpack.c.b16 %v565, %v561
    %v710 = vpack.c.b16 %v566, %v562
    %v711 = vpack.c.b16 %v567, %v563
    %v712 = vpack.c.b16 %v568, %v564
    %v713 = vpack.c.b16 %v573, %v569
    %v714 = vpack.c.b16 %v574, %v570
    %v715 = vpack.c.b16 %v575, %v571
    %v716 = vpack.c.b16 %v576, %v572
    %v717 = vpack.c.b16 %v581, %v577
    %v718 = vpack.c.b16 %v582, %v578
    %v719 = vpack.c.b16 %v583, %v579
    %v720 = vpack.c.b16 %v584, %v580
    %v721 = vpack.c.b16 %v589, %v585
    %v722 = vpack.c.b16 %v590, %v586
    %v723 = vpack.c.b16 %v591, %v587
    %v724 = vpack.c.b16 %v592, %v588
    %v725 = vpack.c.b16 %v597, %v593
    %v726 = vpack.c.b16 %v598, %v594
    %v727 = vpack.c.b16 %v599, %v595
    %v728 = vpack.c.b16 %v600, %v596
    %857 = vmatprep.subr.bf16.mxu0 %v602
    %858 = vmatpush1.bf16.msra.mxu0 %v601
    %859 = vmatprep.subr.bf16.mxu0 %v606
    %860 = vmatpush1.bf16.msra.mxu0 %v605
    %861 = vmatprep.subr.bf16.mxu0 %v610
    %862 = vmatpush1.bf16.msra.mxu0 %v609
    %863 = vmatprep.subr.bf16.mxu0 %v614
    %864 = vmatpush1.bf16.msra.mxu0 %v613
    %865 = vmatprep.subr.bf16.mxu0 %v618
    %866 = vmatpush1.bf16.msra.mxu0 %v617
    %867 = vmatprep.subr.bf16.mxu0 %v622
    %868 = vmatpush1.bf16.msra.mxu0 %v621
    %869 = vmatprep.subr.bf16.mxu0 %v626
    %870 = vmatpush1.bf16.msra.mxu0 %v625
    %871 = vmatprep.subr.bf16.mxu0 %v630
    %872 = vmatpush1.bf16.msra.mxu0 %v629
    %873 = vmatprep.subr.bf16.mxu0 %v634
    %874 = vmatpush1.bf16.msra.mxu0 %v633
    %875 = vmatprep.subr.bf16.mxu0 %v638
    %876 = vmatpush1.bf16.msra.mxu0 %v637
    %877 = vmatprep.subr.bf16.mxu0 %v642
    %878 = vmatpush1.bf16.msra.mxu0 %v641
    %879 = vmatprep.subr.bf16.mxu0 %v646
    %880 = vmatpush1.bf16.msra.mxu0 %v645
    %881 = vmatprep.subr.bf16.mxu0 %v650
    %882 = vmatpush1.bf16.msra.mxu0 %v649
    %883 = vmatprep.subr.bf16.mxu0 %v654
    %884 = vmatpush1.bf16.msra.mxu0 %v653
    %885 = vmatprep.subr.bf16.mxu0 %v658
    %886 = vmatpush1.bf16.msra.mxu0 %v657
    %887 = vmatprep.subr.bf16.mxu0 %v662
    %888 = vmatpush1.bf16.msra.mxu0 %v661
    %889 = vmatprep.mubr.bf16.mxu0 %v210
    %890 = vmatmul.mubr.bf16.gmra.mrb[0].mxu0 %v209
    %v891 = vpop.f32.mrb[0].mxu0
    %v892 = vadd.f32 %v186, %v891
    %v893 = vpop.f32.mrb[0].mxu0
    %v894 = vadd.f32 %v190, %v893
    %v895 = vpop.f32.mrb[0].mxu0
    %v896 = vpop.f32.mrb[0].mxu0
    %897 = vdwg.mxu0
    %898 = vmatprep.subr.bf16.mxu0 %v666
    %899 = vmatpush1.bf16.msra.mxu0 %v665
    %900 = vmatprep.subr.bf16.mxu0 %v670
    %901 = vmatpush1.bf16.msra.mxu0 %v669
    %902 = vmatprep.subr.bf16.mxu0 %v674
    %903 = vmatpush1.bf16.msra.mxu0 %v673
    %904 = vmatprep.subr.bf16.mxu0 %v678
    %905 = vmatpush1.bf16.msra.mxu0 %v677
    %906 = vmatprep.subr.bf16.mxu0 %v682
    %907 = vmatpush1.bf16.msra.mxu0 %v681
    %908 = vmatprep.subr.bf16.mxu0 %v686
    %909 = vmatpush1.bf16.msra.mxu0 %v685
    %910 = vmatprep.subr.bf16.mxu0 %v690
    %911 = vmatpush1.bf16.msra.mxu0 %v689
    %912 = vmatprep.subr.bf16.mxu0 %v694
    %913 = vmatpush1.bf16.msra.mxu0 %v693
    %914 = vmatprep.subr.bf16.mxu0 %v698
    %915 = vmatpush1.bf16.msra.mxu0 %v697
    %916 = vmatprep.subr.bf16.mxu0 %v702
    %917 = vmatpush1.bf16.msra.mxu0 %v701
    %918 = vmatprep.subr.bf16.mxu0 %v706
    %919 = vmatpush1.bf16.msra.mxu0 %v705
    %920 = vmatprep.subr.bf16.mxu0 %v710
    %921 = vmatpush1.bf16.msra.mxu0 %v709
    %922 = vmatprep.subr.bf16.mxu0 %v714
    %923 = vmatpush1.bf16.msra.mxu0 %v713
    %924 = vmatprep.subr.bf16.mxu0 %v718
    %925 = vmatpush1.bf16.msra.mxu0 %v717
    %926 = vmatprep.subr.bf16.mxu0 %v722
    %927 = vmatpush1.bf16.msra.mxu0 %v721
    %928 = vmatprep.subr.bf16.mxu0 %v726
    %929 = vmatpush1.bf16.msra.mxu0 %v725
    %930 = vmatprep.mubr.bf16.mxu0 %v212
    %931 = vmatmul.mubr.bf16.gmra.mrb[0].mxu0 %v211
    %v932 = vpop.f32.mrb[0].mxu0
    %v933 = vadd.f32 %v892, %v932
    %v934 = vpop.f32.mrb[0].mxu0
    %v935 = vadd.f32 %v894, %v934
    %v936 = vpop.f32.mrb[0].mxu0
    %v937 = vpop.f32.mrb[0].mxu0
    %938 = vdwg.mxu0
    %939 = vmatprep.subr.bf16.mxu0 %v604
    %940 = vmatpush1.bf16.msra.mxu0 %v603
    %941 = vmatprep.subr.bf16.mxu0 %v608
    %942 = vmatpush1.bf16.msra.mxu0 %v607
    %943 = vmatprep.subr.bf16.mxu0 %v612
    %944 = vmatpush1.bf16.msra.mxu0 %v611
    %945 = vmatprep.subr.bf16.mxu0 %v616
    %946 = vmatpush1.bf16.msra.mxu0 %v615
    %947 = vmatprep.subr.bf16.mxu0 %v620
    %948 = vmatpush1.bf16.msra.mxu0 %v619
    %949 = vmatprep.subr.bf16.mxu0 %v624
    %950 = vmatpush1.bf16.msra.mxu0 %v623
    %951 = vmatprep.subr.bf16.mxu0 %v628
    %952 = vmatpush1.bf16.msra.mxu0 %v627
    %953 = vmatprep.subr.bf16.mxu0 %v632
    %954 = vmatpush1.bf16.msra.mxu0 %v631
    %955 = vmatprep.subr.bf16.mxu0 %v636
    %956 = vmatpush1.bf16.msra.mxu0 %v635
    %957 = vmatprep.subr.bf16.mxu0 %v640
    %958 = vmatpush1.bf16.msra.mxu0 %v639
    %959 = vmatprep.subr.bf16.mxu0 %v644
    %960 = vmatpush1.bf16.msra.mxu0 %v643
    %961 = vmatprep.subr.bf16.mxu0 %v648
    %962 = vmatpush1.bf16.msra.mxu0 %v647
    %963 = vmatprep.subr.bf16.mxu0 %v652
    %964 = vmatpush1.bf16.msra.mxu0 %v651
    %965 = vmatprep.subr.bf16.mxu0 %v656
    %966 = vmatpush1.bf16.msra.mxu0 %v655
    %967 = vmatprep.subr.bf16.mxu0 %v660
    %968 = vmatpush1.bf16.msra.mxu0 %v659
    %969 = vmatprep.subr.bf16.mxu0 %v664
    %970 = vmatpush1.bf16.msra.mxu0 %v663
    %971 = vmatprep.mubr.bf16.mxu0 %v210
    %972 = vmatmul.mubr.bf16.gmra.mrb[0].mxu0 %v209
    %v973 = vpop.f32.mrb[0].mxu0
    %v974 = vadd.f32 %v194, %v973
    %v975 = vpop.f32.mrb[0].mxu0
    %v976 = vadd.f32 %v198, %v975
    %v977 = vpop.f32.mrb[0].mxu0
    %v978 = vpop.f32.mrb[0].mxu0
    %979 = vdwg.mxu0
    %980 = vmatprep.subr.bf16.mxu0 %v668
    %981 = vmatpush1.bf16.msra.mxu0 %v667
    %982 = vmatprep.subr.bf16.mxu0 %v672
    %983 = vmatpush1.bf16.msra.mxu0 %v671
    %984 = vmatprep.subr.bf16.mxu0 %v676
    %985 = vmatpush1.bf16.msra.mxu0 %v675
    %986 = vmatprep.subr.bf16.mxu0 %v680
    %987 = vmatpush1.bf16.msra.mxu0 %v679
    %988 = vmatprep.subr.bf16.mxu0 %v684
    %989 = vmatpush1.bf16.msra.mxu0 %v683
    %990 = vmatprep.subr.bf16.mxu0 %v688
    %991 = vmatpush1.bf16.msra.mxu0 %v687
    %992 = vmatprep.subr.bf16.mxu0 %v692
    %993 = vmatpush1.bf16.msra.mxu0 %v691
    %994 = vmatprep.subr.bf16.mxu0 %v696
    %995 = vmatpush1.bf16.msra.mxu0 %v695
    %996 = vmatprep.subr.bf16.mxu0 %v700
    %997 = vmatpush1.bf16.msra.mxu0 %v699
    %998 = vmatprep.subr.bf16.mxu0 %v704
    %999 = vmatpush1.bf16.msra.mxu0 %v703
    %1000 = vmatprep.subr.bf16.mxu0 %v708
    %1001 = vmatpush1.bf16.msra.mxu0 %v707
    %1002 = vmatprep.subr.bf16.mxu0 %v712
    %1003 = vmatpush1.bf16.msra.mxu0 %v711
    %1004 = vmatprep.subr.bf16.mxu0 %v716
    %1005 = vmatpush1.bf16.msra.mxu0 %v715
    %1006 = vmatprep.subr.bf16.mxu0 %v720
    %1007 = vmatpush1.bf16.msra.mxu0 %v719
    %1008 = vmatprep.subr.bf16.mxu0 %v724
    %1009 = vmatpush1.bf16.msra.mxu0 %v723
    %1010 = vmatprep.subr.bf16.mxu0 %v728
    %1011 = vmatpush1.bf16.msra.mxu0 %v727
    %1012 = vmatprep.mubr.bf16.mxu0 %v212
    %1013 = vmatmul.mubr.bf16.gmra.mrb[0].mxu0 %v211
    %v1014 = vpop.f32.mrb[0].mxu0
    %v1015 = vadd.f32 %v974, %v1014
    %v1016 = vpop.f32.mrb[0].mxu0
    %v1017 = vadd.f32 %v976, %v1016
    %v1018 = vpop.f32.mrb[0].mxu0
    %v1019 = vpop.f32.mrb[0].mxu0
    %1020 = vdwg.mxu0
    %v1021 = vmax.f32 %v933, 0.0
    %v1022 = vmax.f32 %v935, 0.0
    %v1023 = vmax.f32 %v1015, 0.0
    %v1024 = vmax.f32 %v1017, 0.0
    %v1025 = vpack.c.bf16 %v1021, %v1021
    %v1026 = vpack.c.bf16 %v1022, %v1022
    %v1027 = vpack.c.bf16 %v1023, %v1023
    %v1028 = vpack.c.bf16 %v1024, %v1024
    %v1029 = vld [vmem:[#allocation4] sm:$0xff]
    %v1030 = vld [vmem:[#allocation4 + $0x8] sm:$0xff]
    %v1031 = vld [vmem:[#allocation4 + $0x10] sm:$0xff]
    %v1032 = vld [vmem:[#allocation4 + $0x18] sm:$0xff]
    %v1033 = vld [vmem:[#allocation4 + $0x20] sm:$0xff]
    %v1034 = vld [vmem:[#allocation4 + $0x28] sm:$0xff]
    %v1035 = vld [vmem:[#allocation4 + $0x30] sm:$0xff]
    %v1036 = vld [vmem:[#allocation4 + $0x38] sm:$0xff]
    %v1037 = vld [vmem:[#allocation4 + $0x40] sm:$0xff]
    %v1038 = vld [vmem:[#allocation4 + $0x48] sm:$0xff]
    %v1039 = vld [vmem:[#allocation4 + $0x50] sm:$0xff]
    %v1040 = vld [vmem:[#allocation4 + $0x58] sm:$0xff]
    %v1041 = vld [vmem:[#allocation4 + $0x60] sm:$0xff]
    %v1042 = vld [vmem:[#allocation4 + $0x68] sm:$0xff]
    %v1043 = vld [vmem:[#allocation4 + $0x70] sm:$0xff]
    %v1044 = vld [vmem:[#allocation4 + $0x78] sm:$0xff]
    %v1045 = vld [vmem:[#allocation4 + $0x80] sm:$0xff]
    %v1046 = vld [vmem:[#allocation4 + $0x88] sm:$0xff]
    %v1047 = vld [vmem:[#allocation4 + $0x90] sm:$0xff]
    %v1048 = vld [vmem:[#allocation4 + $0x98] sm:$0xff]
    %v1049 = vld [vmem:[#allocation4 + $0xa0] sm:$0xff]
    %v1050 = vld [vmem:[#allocation4 + $0xa8] sm:$0xff]
    %v1051 = vld [vmem:[#allocation4 + $0xb0] sm:$0xff]
    %v1052 = vld [vmem:[#allocation4 + $0xb8] sm:$0xff]
    %v1053 = vld [vmem:[#allocation4 + $0xc0] sm:$0xff]
    %v1054 = vld [vmem:[#allocation4 + $0xc8] sm:$0xff]
    %v1055 = vld [vmem:[#allocation4 + $0xd0] sm:$0xff]
    %v1056 = vld [vmem:[#allocation4 + $0xd8] sm:$0xff]
    %v1057 = vld [vmem:[#allocation4 + $0xe0] sm:$0xff]
    %v1058 = vld [vmem:[#allocation4 + $0xe8] sm:$0xff]
    %v1059 = vld [vmem:[#allocation4 + $0xf0] sm:$0xff]
    %v1060 = vld [vmem:[#allocation4 + $0xf8] sm:$0xff]
    %v1061 = vld [vmem:[#allocation4 + $0x100] sm:$0xff]
    %v1062 = vld [vmem:[#allocation4 + $0x108] sm:$0xff]
    %v1063 = vld [vmem:[#allocation4 + $0x110] sm:$0xff]
    %v1064 = vld [vmem:[#allocation4 + $0x118] sm:$0xff]
    %v1065 = vld [vmem:[#allocation4 + $0x120] sm:$0xff]
    %v1066 = vld [vmem:[#allocation4 + $0x128] sm:$0xff]
    %v1067 = vld [vmem:[#allocation4 + $0x130] sm:$0xff]
    %v1068 = vld [vmem:[#allocation4 + $0x138] sm:$0xff]
    %v1069 = vld [vmem:[#allocation4 + $0x140] sm:$0xff]
    %v1070 = vld [vmem:[#allocation4 + $0x148] sm:$0xff]
    %v1071 = vld [vmem:[#allocation4 + $0x150] sm:$0xff]
    %v1072 = vld [vmem:[#allocation4 + $0x158] sm:$0xff]
    %v1073 = vld [vmem:[#allocation4 + $0x160] sm:$0xff]
    %v1074 = vld [vmem:[#allocation4 + $0x168] sm:$0xff]
    %v1075 = vld [vmem:[#allocation4 + $0x170] sm:$0xff]
    %v1076 = vld [vmem:[#allocation4 + $0x178] sm:$0xff]
    %v1077 = vld [vmem:[#allocation4 + $0x180] sm:$0xff]
    %v1078 = vld [vmem:[#allocation4 + $0x188] sm:$0xff]
    %v1079 = vld [vmem:[#allocation4 + $0x190] sm:$0xff]
    %v1080 = vld [vmem:[#allocation4 + $0x198] sm:$0xff]
    %v1081 = vld [vmem:[#allocation4 + $0x1a0] sm:$0xff]
    %v1082 = vld [vmem:[#allocation4 + $0x1a8] sm:$0xff]
    %v1083 = vld [vmem:[#allocation4 + $0x1b0] sm:$0xff]
    %v1084 = vld [vmem:[#allocation4 + $0x1b8] sm:$0xff]
    %v1085 = vld [vmem:[#allocation4 + $0x1c0] sm:$0xff]
    %v1086 = vld [vmem:[#allocation4 + $0x1c8] sm:$0xff]
    %v1087 = vld [vmem:[#allocation4 + $0x1d0] sm:$0xff]
    %v1088 = vld [vmem:[#allocation4 + $0x1d8] sm:$0xff]
    %v1089 = vld [vmem:[#allocation4 + $0x1e0] sm:$0xff]
    %v1090 = vld [vmem:[#allocation4 + $0x1e8] sm:$0xff]
    %v1091 = vld [vmem:[#allocation4 + $0x1f0] sm:$0xff]
    %v1092 = vld [vmem:[#allocation4 + $0x1f8] sm:$0xff]
    %v1093 = vld [vmem:[#allocation4 + $0x200] sm:$0xff]
    %v1094 = vld [vmem:[#allocation4 + $0x208] sm:$0xff]
    %v1095 = vld [vmem:[#allocation4 + $0x210] sm:$0xff]
    %v1096 = vld [vmem:[#allocation4 + $0x218] sm:$0xff]
    %v1097 = vld [vmem:[#allocation4 + $0x220] sm:$0xff]
    %v1098 = vld [vmem:[#allocation4 + $0x228] sm:$0xff]
    %v1099 = vld [vmem:[#allocation4 + $0x230] sm:$0xff]
    %v1100 = vld [vmem:[#allocation4 + $0x238] sm:$0xff]
    %v1101 = vld [vmem:[#allocation4 + $0x240] sm:$0xff]
    %v1102 = vld [vmem:[#allocation4 + $0x248] sm:$0xff]
    %v1103 = vld [vmem:[#allocation4 + $0x250] sm:$0xff]
    %v1104 = vld [vmem:[#allocation4 + $0x258] sm:$0xff]
    %v1105 = vld [vmem:[#allocation4 + $0x260] sm:$0xff]
    %v1106 = vld [vmem:[#allocation4 + $0x268] sm:$0xff]
    %v1107 = vld [vmem:[#allocation4 + $0x270] sm:$0xff]
    %v1108 = vld [vmem:[#allocation4 + $0x278] sm:$0xff]
    %v1109 = vld [vmem:[#allocation4 + $0x280] sm:$0xff]
    %v1110 = vld [vmem:[#allocation4 + $0x288] sm:$0xff]
    %v1111 = vld [vmem:[#allocation4 + $0x290] sm:$0xff]
    %v1112 = vld [vmem:[#allocation4 + $0x298] sm:$0xff]
    %v1113 = vld [vmem:[#allocation4 + $0x2a0] sm:$0xff]
    %v1114 = vld [vmem:[#allocation4 + $0x2a8] sm:$0xff]
    %v1115 = vld [vmem:[#allocation4 + $0x2b0] sm:$0xff]
    %v1116 = vld [vmem:[#allocation4 + $0x2b8] sm:$0xff]
    %v1117 = vld [vmem:[#allocation4 + $0x2c0] sm:$0xff]
    %v1118 = vld [vmem:[#allocation4 + $0x2c8] sm:$0xff]
    %v1119 = vld [vmem:[#allocation4 + $0x2d0] sm:$0xff]
    %v1120 = vld [vmem:[#allocation4 + $0x2d8] sm:$0xff]
    %v1121 = vld [vmem:[#allocation4 + $0x2e0] sm:$0xff]
    %v1122 = vld [vmem:[#allocation4 + $0x2e8] sm:$0xff]
    %v1123 = vld [vmem:[#allocation4 + $0x2f0] sm:$0xff]
    %v1124 = vld [vmem:[#allocation4 + $0x2f8] sm:$0xff]
    %v1125 = vld [vmem:[#allocation4 + $0x300] sm:$0xff]
    %v1126 = vld [vmem:[#allocation4 + $0x308] sm:$0xff]
    %v1127 = vld [vmem:[#allocation4 + $0x310] sm:$0xff]
    %v1128 = vld [vmem:[#allocation4 + $0x318] sm:$0xff]
    %v1129 = vld [vmem:[#allocation4 + $0x320] sm:$0xff]
    %v1130 = vld [vmem:[#allocation4 + $0x328] sm:$0xff]
    %v1131 = vld [vmem:[#allocation4 + $0x330] sm:$0xff]
    %v1132 = vld [vmem:[#allocation4 + $0x338] sm:$0xff]
    %v1133 = vld [vmem:[#allocation4 + $0x340] sm:$0xff]
    %v1134 = vld [vmem:[#allocation4 + $0x348] sm:$0xff]
    %v1135 = vld [vmem:[#allocation4 + $0x350] sm:$0xff]
    %v1136 = vld [vmem:[#allocation4 + $0x358] sm:$0xff]
    %v1137 = vld [vmem:[#allocation4 + $0x360] sm:$0xff]
    %v1138 = vld [vmem:[#allocation4 + $0x368] sm:$0xff]
    %v1139 = vld [vmem:[#allocation4 + $0x370] sm:$0xff]
    %v1140 = vld [vmem:[#allocation4 + $0x378] sm:$0xff]
    %v1141 = vld [vmem:[#allocation4 + $0x380] sm:$0xff]
    %v1142 = vld [vmem:[#allocation4 + $0x388] sm:$0xff]
    %v1143 = vld [vmem:[#allocation4 + $0x390] sm:$0xff]
    %v1144 = vld [vmem:[#allocation4 + $0x398] sm:$0xff]
    %v1145 = vld [vmem:[#allocation4 + $0x3a0] sm:$0xff]
    %v1146 = vld [vmem:[#allocation4 + $0x3a8] sm:$0xff]
    %v1147 = vld [vmem:[#allocation4 + $0x3b0] sm:$0xff]
    %v1148 = vld [vmem:[#allocation4 + $0x3b8] sm:$0xff]
    %v1149 = vld [vmem:[#allocation4 + $0x3c0] sm:$0xff]
    %v1150 = vld [vmem:[#allocation4 + $0x3c8] sm:$0xff]
    %v1151 = vld [vmem:[#allocation4 + $0x3d0] sm:$0xff]
    %v1152 = vld [vmem:[#allocation4 + $0x3d8] sm:$0xff]
    %v1153 = vld [vmem:[#allocation4 + $0x3e0] sm:$0xff]
    %v1154 = vld [vmem:[#allocation4 + $0x3e8] sm:$0xff]
    %v1155 = vld [vmem:[#allocation4 + $0x3f0] sm:$0xff]
    %v1156 = vld [vmem:[#allocation4 + $0x3f8] sm:$0xff]
    %v1157 = vld [vmem:[%s5] sm:$0xf]
    %v1159 = vlaneseq
    %v1160 = vshrl.u32 %v1159, 7
    %v1161 = vsub.s32 0, %v1160
    %v1162 = vrot.slane %v1157, %v1161
    %v1163 = vlaneseq
    %v1164 = vshrl.u32 %v1163, 7
    %v1165 = vsub.s32 1, %v1164
    %v1166 = vrot.slane %v1157, %v1165
    %v1167 = vlaneseq
    %v1168 = vshrl.u32 %v1167, 7
    %v1169 = vsub.s32 2, %v1168
    %v1170 = vrot.slane %v1157, %v1169
    %v1171 = vlaneseq
    %v1172 = vshrl.u32 %v1171, 7
    %v1173 = vsub.s32 3, %v1172
    %v1174 = vrot.slane %v1157, %v1173
    %v1307 = vunpack.c.l.b16 %v1029
    %v1308 = vunpack.c.h.b16 %v1029
    %v1309 = vunpack.c.l.b16 %v1030
    %v1310 = vunpack.c.h.b16 %v1030
    %v1311 = vunpack.c.l.b16 %v1031
    %v1312 = vunpack.c.h.b16 %v1031
    %v1313 = vunpack.c.l.b16 %v1032
    %v1314 = vunpack.c.h.b16 %v1032
    %v1315 = vunpack.c.l.b16 %v1033
    %v1316 = vunpack.c.h.b16 %v1033
    %v1317 = vunpack.c.l.b16 %v1034
    %v1318 = vunpack.c.h.b16 %v1034
    %v1319 = vunpack.c.l.b16 %v1035
    %v1320 = vunpack.c.h.b16 %v1035
    %v1321 = vunpack.c.l.b16 %v1036
    %v1322 = vunpack.c.h.b16 %v1036
    %v1323 = vunpack.c.l.b16 %v1037
    %v1324 = vunpack.c.h.b16 %v1037
    %v1325 = vunpack.c.l.b16 %v1038
    %v1326 = vunpack.c.h.b16 %v1038
    %v1327 = vunpack.c.l.b16 %v1039
    %v1328 = vunpack.c.h.b16 %v1039
    %v1329 = vunpack.c.l.b16 %v1040
    %v1330 = vunpack.c.h.b16 %v1040
    %v1331 = vunpack.c.l.b16 %v1041
    %v1332 = vunpack.c.h.b16 %v1041
    %v1333 = vunpack.c.l.b16 %v1042
    %v1334 = vunpack.c.h.b16 %v1042
    %v1335 = vunpack.c.l.b16 %v1043
    %v1336 = vunpack.c.h.b16 %v1043
    %v1337 = vunpack.c.l.b16 %v1044
    %v1338 = vunpack.c.h.b16 %v1044
    %v1339 = vunpack.c.l.b16 %v1045
    %v1340 = vunpack.c.h.b16 %v1045
    %v1341 = vunpack.c.l.b16 %v1046
    %v1342 = vunpack.c.h.b16 %v1046
    %v1343 = vunpack.c.l.b16 %v1047
    %v1344 = vunpack.c.h.b16 %v1047
    %v1345 = vunpack.c.l.b16 %v1048
    %v1346 = vunpack.c.h.b16 %v1048
    %v1347 = vunpack.c.l.b16 %v1049
    %v1348 = vunpack.c.h.b16 %v1049
    %v1349 = vunpack.c.l.b16 %v1050
    %v1350 = vunpack.c.h.b16 %v1050
    %v1351 = vunpack.c.l.b16 %v1051
    %v1352 = vunpack.c.h.b16 %v1051
    %v1353 = vunpack.c.l.b16 %v1052
    %v1354 = vunpack.c.h.b16 %v1052
    %v1355 = vunpack.c.l.b16 %v1053
    %v1356 = vunpack.c.h.b16 %v1053
    %v1357 = vunpack.c.l.b16 %v1054
    %v1358 = vunpack.c.h.b16 %v1054
    %v1359 = vunpack.c.l.b16 %v1055
    %v1360 = vunpack.c.h.b16 %v1055
    %v1361 = vunpack.c.l.b16 %v1056
    %v1362 = vunpack.c.h.b16 %v1056
    %v1363 = vunpack.c.l.b16 %v1057
    %v1364 = vunpack.c.h.b16 %v1057
    %v1365 = vunpack.c.l.b16 %v1058
    %v1366 = vunpack.c.h.b16 %v1058
    %v1367 = vunpack.c.l.b16 %v1059
    %v1368 = vunpack.c.h.b16 %v1059
    %v1369 = vunpack.c.l.b16 %v1060
    %v1370 = vunpack.c.h.b16 %v1060
    %v1371 = vunpack.c.l.b16 %v1061
    %v1372 = vunpack.c.h.b16 %v1061
    %v1373 = vunpack.c.l.b16 %v1062
    %v1374 = vunpack.c.h.b16 %v1062
    %v1375 = vunpack.c.l.b16 %v1063
    %v1376 = vunpack.c.h.b16 %v1063
    %v1377 = vunpack.c.l.b16 %v1064
    %v1378 = vunpack.c.h.b16 %v1064
    %v1379 = vunpack.c.l.b16 %v1065
    %v1380 = vunpack.c.h.b16 %v1065
    %v1381 = vunpack.c.l.b16 %v1066
    %v1382 = vunpack.c.h.b16 %v1066
    %v1383 = vunpack.c.l.b16 %v1067
    %v1384 = vunpack.c.h.b16 %v1067
    %v1385 = vunpack.c.l.b16 %v1068
    %v1386 = vunpack.c.h.b16 %v1068
    %v1387 = vunpack.c.l.b16 %v1069
    %v1388 = vunpack.c.h.b16 %v1069
    %v1389 = vunpack.c.l.b16 %v1070
    %v1390 = vunpack.c.h.b16 %v1070
    %v1391 = vunpack.c.l.b16 %v1071
    %v1392 = vunpack.c.h.b16 %v1071
    %v1393 = vunpack.c.l.b16 %v1072
    %v1394 = vunpack.c.h.b16 %v1072
    %v1395 = vunpack.c.l.b16 %v1073
    %v1396 = vunpack.c.h.b16 %v1073
    %v1397 = vunpack.c.l.b16 %v1074
    %v1398 = vunpack.c.h.b16 %v1074
    %v1399 = vunpack.c.l.b16 %v1075
    %v1400 = vunpack.c.h.b16 %v1075
    %v1401 = vunpack.c.l.b16 %v1076
    %v1402 = vunpack.c.h.b16 %v1076
    %v1403 = vunpack.c.l.b16 %v1077
    %v1404 = vunpack.c.h.b16 %v1077
    %v1405 = vunpack.c.l.b16 %v1078
    %v1406 = vunpack.c.h.b16 %v1078
    %v1407 = vunpack.c.l.b16 %v1079
    %v1408 = vunpack.c.h.b16 %v1079
    %v1409 = vunpack.c.l.b16 %v1080
    %v1410 = vunpack.c.h.b16 %v1080
    %v1411 = vunpack.c.l.b16 %v1081
    %v1412 = vunpack.c.h.b16 %v1081
    %v1413 = vunpack.c.l.b16 %v1082
    %v1414 = vunpack.c.h.b16 %v1082
    %v1415 = vunpack.c.l.b16 %v1083
    %v1416 = vunpack.c.h.b16 %v1083
    %v1417 = vunpack.c.l.b16 %v1084
    %v1418 = vunpack.c.h.b16 %v1084
    %v1419 = vunpack.c.l.b16 %v1085
    %v1420 = vunpack.c.h.b16 %v1085
    %v1421 = vunpack.c.l.b16 %v1086
    %v1422 = vunpack.c.h.b16 %v1086
    %v1423 = vunpack.c.l.b16 %v1087
    %v1424 = vunpack.c.h.b16 %v1087
    %v1425 = vunpack.c.l.b16 %v1088
    %v1426 = vunpack.c.h.b16 %v1088
    %v1427 = vunpack.c.l.b16 %v1089
    %v1428 = vunpack.c.h.b16 %v1089
    %v1429 = vunpack.c.l.b16 %v1090
    %v1430 = vunpack.c.h.b16 %v1090
    %v1431 = vunpack.c.l.b16 %v1091
    %v1432 = vunpack.c.h.b16 %v1091
    %v1433 = vunpack.c.l.b16 %v1092
    %v1434 = vunpack.c.h.b16 %v1092
    %v1435 = vunpack.c.l.b16 %v1093
    %v1436 = vunpack.c.h.b16 %v1093
    %v1437 = vunpack.c.l.b16 %v1094
    %v1438 = vunpack.c.h.b16 %v1094
    %v1439 = vunpack.c.l.b16 %v1095
    %v1440 = vunpack.c.h.b16 %v1095
    %v1441 = vunpack.c.l.b16 %v1096
    %v1442 = vunpack.c.h.b16 %v1096
    %v1443 = vunpack.c.l.b16 %v1097
    %v1444 = vunpack.c.h.b16 %v1097
    %v1445 = vunpack.c.l.b16 %v1098
    %v1446 = vunpack.c.h.b16 %v1098
    %v1447 = vunpack.c.l.b16 %v1099
    %v1448 = vunpack.c.h.b16 %v1099
    %v1449 = vunpack.c.l.b16 %v1100
    %v1450 = vunpack.c.h.b16 %v1100
    %v1451 = vunpack.c.l.b16 %v1101
    %v1452 = vunpack.c.h.b16 %v1101
    %v1453 = vunpack.c.l.b16 %v1102
    %v1454 = vunpack.c.h.b16 %v1102
    %v1455 = vunpack.c.l.b16 %v1103
    %v1456 = vunpack.c.h.b16 %v1103
    %v1457 = vunpack.c.l.b16 %v1104
    %v1458 = vunpack.c.h.b16 %v1104
    %v1459 = vunpack.c.l.b16 %v1105
    %v1460 = vunpack.c.h.b16 %v1105
    %v1461 = vunpack.c.l.b16 %v1106
    %v1462 = vunpack.c.h.b16 %v1106
    %v1463 = vunpack.c.l.b16 %v1107
    %v1464 = vunpack.c.h.b16 %v1107
    %v1465 = vunpack.c.l.b16 %v1108
    %v1466 = vunpack.c.h.b16 %v1108
    %v1467 = vunpack.c.l.b16 %v1109
    %v1468 = vunpack.c.h.b16 %v1109
    %v1469 = vunpack.c.l.b16 %v1110
    %v1470 = vunpack.c.h.b16 %v1110
    %v1471 = vunpack.c.l.b16 %v1111
    %v1472 = vunpack.c.h.b16 %v1111
    %v1473 = vunpack.c.l.b16 %v1112
    %v1474 = vunpack.c.h.b16 %v1112
    %v1475 = vunpack.c.l.b16 %v1113
    %v1476 = vunpack.c.h.b16 %v1113
    %v1477 = vunpack.c.l.b16 %v1114
    %v1478 = vunpack.c.h.b16 %v1114
    %v1479 = vunpack.c.l.b16 %v1115
    %v1480 = vunpack.c.h.b16 %v1115
    %v1481 = vunpack.c.l.b16 %v1116
    %v1482 = vunpack.c.h.b16 %v1116
    %v1483 = vunpack.c.l.b16 %v1117
    %v1484 = vunpack.c.h.b16 %v1117
    %v1485 = vunpack.c.l.b16 %v1118
    %v1486 = vunpack.c.h.b16 %v1118
    %v1487 = vunpack.c.l.b16 %v1119
    %v1488 = vunpack.c.h.b16 %v1119
    %v1489 = vunpack.c.l.b16 %v1120
    %v1490 = vunpack.c.h.b16 %v1120
    %v1491 = vunpack.c.l.b16 %v1121
    %v1492 = vunpack.c.h.b16 %v1121
    %v1493 = vunpack.c.l.b16 %v1122
    %v1494 = vunpack.c.h.b16 %v1122
    %v1495 = vunpack.c.l.b16 %v1123
    %v1496 = vunpack.c.h.b16 %v1123
    %v1497 = vunpack.c.l.b16 %v1124
    %v1498 = vunpack.c.h.b16 %v1124
    %v1499 = vunpack.c.l.b16 %v1125
    %v1500 = vunpack.c.h.b16 %v1125
    %v1501 = vunpack.c.l.b16 %v1126
    %v1502 = vunpack.c.h.b16 %v1126
    %v1503 = vunpack.c.l.b16 %v1127
    %v1504 = vunpack.c.h.b16 %v1127
    %v1505 = vunpack.c.l.b16 %v1128
    %v1506 = vunpack.c.h.b16 %v1128
    %v1507 = vunpack.c.l.b16 %v1129
    %v1508 = vunpack.c.h.b16 %v1129
    %v1509 = vunpack.c.l.b16 %v1130
    %v1510 = vunpack.c.h.b16 %v1130
    %v1511 = vunpack.c.l.b16 %v1131
    %v1512 = vunpack.c.h.b16 %v1131
    %v1513 = vunpack.c.l.b16 %v1132
    %v1514 = vunpack.c.h.b16 %v1132
    %v1515 = vunpack.c.l.b16 %v1133
    %v1516 = vunpack.c.h.b16 %v1133
    %v1517 = vunpack.c.l.b16 %v1134
    %v1518 = vunpack.c.h.b16 %v1134
    %v1519 = vunpack.c.l.b16 %v1135
    %v1520 = vunpack.c.h.b16 %v1135
    %v1521 = vunpack.c.l.b16 %v1136
    %v1522 = vunpack.c.h.b16 %v1136
    %v1523 = vunpack.c.l.b16 %v1137
    %v1524 = vunpack.c.h.b16 %v1137
    %v1525 = vunpack.c.l.b16 %v1138
    %v1526 = vunpack.c.h.b16 %v1138
    %v1527 = vunpack.c.l.b16 %v1139
    %v1528 = vunpack.c.h.b16 %v1139
    %v1529 = vunpack.c.l.b16 %v1140
    %v1530 = vunpack.c.h.b16 %v1140
    %v1531 = vunpack.c.l.b16 %v1141
    %v1532 = vunpack.c.h.b16 %v1141
    %v1533 = vunpack.c.l.b16 %v1142
    %v1534 = vunpack.c.h.b16 %v1142
    %v1535 = vunpack.c.l.b16 %v1143
    %v1536 = vunpack.c.h.b16 %v1143
    %v1537 = vunpack.c.l.b16 %v1144
    %v1538 = vunpack.c.h.b16 %v1144
    %v1539 = vunpack.c.l.b16 %v1145
    %v1540 = vunpack.c.h.b16 %v1145
    %v1541 = vunpack.c.l.b16 %v1146
    %v1542 = vunpack.c.h.b16 %v1146
    %v1543 = vunpack.c.l.b16 %v1147
    %v1544 = vunpack.c.h.b16 %v1147
    %v1545 = vunpack.c.l.b16 %v1148
    %v1546 = vunpack.c.h.b16 %v1148
    %v1547 = vunpack.c.l.b16 %v1149
    %v1548 = vunpack.c.h.b16 %v1149
    %v1549 = vunpack.c.l.b16 %v1150
    %v1550 = vunpack.c.h.b16 %v1150
    %v1551 = vunpack.c.l.b16 %v1151
    %v1552 = vunpack.c.h.b16 %v1151
    %v1553 = vunpack.c.l.b16 %v1152
    %v1554 = vunpack.c.h.b16 %v1152
    %v1555 = vunpack.c.l.b16 %v1153
    %v1556 = vunpack.c.h.b16 %v1153
    %v1557 = vunpack.c.l.b16 %v1154
    %v1558 = vunpack.c.h.b16 %v1154
    %v1559 = vunpack.c.l.b16 %v1155
    %v1560 = vunpack.c.h.b16 %v1155
    %v1561 = vunpack.c.l.b16 %v1156
    %v1562 = vunpack.c.h.b16 %v1156
    %v1563 = vpack.c.b16 %v1311, %v1307
    %v1564 = vpack.c.b16 %v1312, %v1308
    %v1565 = vpack.c.b16 %v1313, %v1309
    %v1566 = vpack.c.b16 %v1314, %v1310
    %v1567 = vpack.c.b16 %v1319, %v1315
    %v1568 = vpack.c.b16 %v1320, %v1316
    %v1569 = vpack.c.b16 %v1321, %v1317
    %v1570 = vpack.c.b16 %v1322, %v1318
    %v1571 = vpack.c.b16 %v1327, %v1323
    %v1572 = vpack.c.b16 %v1328, %v1324
    %v1573 = vpack.c.b16 %v1329, %v1325
    %v1574 = vpack.c.b16 %v1330, %v1326
    %v1575 = vpack.c.b16 %v1335, %v1331
    %v1576 = vpack.c.b16 %v1336, %v1332
    %v1577 = vpack.c.b16 %v1337, %v1333
    %v1578 = vpack.c.b16 %v1338, %v1334
    %v1579 = vpack.c.b16 %v1343, %v1339
    %v1580 = vpack.c.b16 %v1344, %v1340
    %v1581 = vpack.c.b16 %v1345, %v1341
    %v1582 = vpack.c.b16 %v1346, %v1342
    %v1583 = vpack.c.b16 %v1351, %v1347
    %v1584 = vpack.c.b16 %v1352, %v1348
    %v1585 = vpack.c.b16 %v1353, %v1349
    %v1586 = vpack.c.b16 %v1354, %v1350
    %v1587 = vpack.c.b16 %v1359, %v1355
    %v1588 = vpack.c.b16 %v1360, %v1356
    %v1589 = vpack.c.b16 %v1361, %v1357
    %v1590 = vpack.c.b16 %v1362, %v1358
    %v1591 = vpack.c.b16 %v1367, %v1363
    %v1592 = vpack.c.b16 %v1368, %v1364
    %v1593 = vpack.c.b16 %v1369, %v1365
    %v1594 = vpack.c.b16 %v1370, %v1366
    %v1595 = vpack.c.b16 %v1375, %v1371
    %v1596 = vpack.c.b16 %v1376, %v1372
    %v1597 = vpack.c.b16 %v1377, %v1373
    %v1598 = vpack.c.b16 %v1378, %v1374
    %v1599 = vpack.c.b16 %v1383, %v1379
    %v1600 = vpack.c.b16 %v1384, %v1380
    %v1601 = vpack.c.b16 %v1385, %v1381
    %v1602 = vpack.c.b16 %v1386, %v1382
    %v1603 = vpack.c.b16 %v1391, %v1387
    %v1604 = vpack.c.b16 %v1392, %v1388
    %v1605 = vpack.c.b16 %v1393, %v1389
    %v1606 = vpack.c.b16 %v1394, %v1390
    %v1607 = vpack.c.b16 %v1399, %v1395
    %v1608 = vpack.c.b16 %v1400, %v1396
    %v1609 = vpack.c.b16 %v1401, %v1397
    %v1610 = vpack.c.b16 %v1402, %v1398
    %v1611 = vpack.c.b16 %v1407, %v1403
    %v1612 = vpack.c.b16 %v1408, %v1404
    %v1613 = vpack.c.b16 %v1409, %v1405
    %v1614 = vpack.c.b16 %v1410, %v1406
    %v1615 = vpack.c.b16 %v1415, %v1411
    %v1616 = vpack.c.b16 %v1416, %v1412
    %v1617 = vpack.c.b16 %v1417, %v1413
    %v1618 = vpack.c.b16 %v1418, %v1414
    %v1619 = vpack.c.b16 %v1423, %v1419
    %v1620 = vpack.c.b16 %v1424, %v1420
    %v1621 = vpack.c.b16 %v1425, %v1421
    %v1622 = vpack.c.b16 %v1426, %v1422
    %v1623 = vpack.c.b16 %v1431, %v1427
    %v1624 = vpack.c.b16 %v1432, %v1428
    %v1625 = vpack.c.b16 %v1433, %v1429
    %v1626 = vpack.c.b16 %v1434, %v1430
    %v1627 = vpack.c.b16 %v1439, %v1435
    %v1628 = vpack.c.b16 %v1440, %v1436
    %v1629 = vpack.c.b16 %v1441, %v1437
    %v1630 = vpack.c.b16 %v1442, %v1438
    %v1631 = vpack.c.b16 %v1447, %v1443
    %v1632 = vpack.c.b16 %v1448, %v1444
    %v1633 = vpack.c.b16 %v1449, %v1445
    %v1634 = vpack.c.b16 %v1450, %v1446
    %v1635 = vpack.c.b16 %v1455, %v1451
    %v1636 = vpack.c.b16 %v1456, %v1452
    %v1637 = vpack.c.b16 %v1457, %v1453
    %v1638 = vpack.c.b16 %v1458, %v1454
    %v1639 = vpack.c.b16 %v1463, %v1459
    %v1640 = vpack.c.b16 %v1464, %v1460
    %v1641 = vpack.c.b16 %v1465, %v1461
    %v1642 = vpack.c.b16 %v1466, %v1462
    %v1643 = vpack.c.b16 %v1471, %v1467
    %v1644 = vpack.c.b16 %v1472, %v1468
    %v1645 = vpack.c.b16 %v1473, %v1469
    %v1646 = vpack.c.b16 %v1474, %v1470
    %v1647 = vpack.c.b16 %v1479, %v1475
    %v1648 = vpack.c.b16 %v1480, %v1476
    %v1649 = vpack.c.b16 %v1481, %v1477
    %v1650 = vpack.c.b16 %v1482, %v1478
    %v1651 = vpack.c.b16 %v1487, %v1483
    %v1652 = vpack.c.b16 %v1488, %v1484
    %v1653 = vpack.c.b16 %v1489, %v1485
    %v1654 = vpack.c.b16 %v1490, %v1486
    %v1655 = vpack.c.b16 %v1495, %v1491
    %v1656 = vpack.c.b16 %v1496, %v1492
    %v1657 = vpack.c.b16 %v1497, %v1493
    %v1658 = vpack.c.b16 %v1498, %v1494
    %v1659 = vpack.c.b16 %v1503, %v1499
    %v1660 = vpack.c.b16 %v1504, %v1500
    %v1661 = vpack.c.b16 %v1505, %v1501
    %v1662 = vpack.c.b16 %v1506, %v1502
    %v1663 = vpack.c.b16 %v1511, %v1507
    %v1664 = vpack.c.b16 %v1512, %v1508
    %v1665 = vpack.c.b16 %v1513, %v1509
    %v1666 = vpack.c.b16 %v1514, %v1510
    %v1667 = vpack.c.b16 %v1519, %v1515
    %v1668 = vpack.c.b16 %v1520, %v1516
    %v1669 = vpack.c.b16 %v1521, %v1517
    %v1670 = vpack.c.b16 %v1522, %v1518
    %v1671 = vpack.c.b16 %v1527, %v1523
    %v1672 = vpack.c.b16 %v1528, %v1524
    %v1673 = vpack.c.b16 %v1529, %v1525
    %v1674 = vpack.c.b16 %v1530, %v1526
    %v1675 = vpack.c.b16 %v1535, %v1531
    %v1676 = vpack.c.b16 %v1536, %v1532
    %v1677 = vpack.c.b16 %v1537, %v1533
    %v1678 = vpack.c.b16 %v1538, %v1534
    %v1679 = vpack.c.b16 %v1543, %v1539
    %v1680 = vpack.c.b16 %v1544, %v1540
    %v1681 = vpack.c.b16 %v1545, %v1541
    %v1682 = vpack.c.b16 %v1546, %v1542
    %v1683 = vpack.c.b16 %v1551, %v1547
    %v1684 = vpack.c.b16 %v1552, %v1548
    %v1685 = vpack.c.b16 %v1553, %v1549
    %v1686 = vpack.c.b16 %v1554, %v1550
    %v1687 = vpack.c.b16 %v1559, %v1555
    %v1688 = vpack.c.b16 %v1560, %v1556
    %v1689 = vpack.c.b16 %v1561, %v1557
    %v1690 = vpack.c.b16 %v1562, %v1558
    %1819 = vmatprep.subr.bf16.mxu0 %v1564
    %1820 = vmatpush1.bf16.msra.mxu0 %v1563
    %1821 = vmatprep.subr.bf16.mxu0 %v1568
    %1822 = vmatpush1.bf16.msra.mxu0 %v1567
    %1823 = vmatprep.subr.bf16.mxu0 %v1572
    %1824 = vmatpush1.bf16.msra.mxu0 %v1571
    %1825 = vmatprep.subr.bf16.mxu0 %v1576
    %1826 = vmatpush1.bf16.msra.mxu0 %v1575
    %1827 = vmatprep.subr.bf16.mxu0 %v1580
    %1828 = vmatpush1.bf16.msra.mxu0 %v1579
    %1829 = vmatprep.subr.bf16.mxu0 %v1584
    %1830 = vmatpush1.bf16.msra.mxu0 %v1583
    %1831 = vmatprep.subr.bf16.mxu0 %v1588
    %1832 = vmatpush1.bf16.msra.mxu0 %v1587
    %1833 = vmatprep.subr.bf16.mxu0 %v1592
    %1834 = vmatpush1.bf16.msra.mxu0 %v1591
    %1835 = vmatprep.subr.bf16.mxu0 %v1596
    %1836 = vmatpush1.bf16.msra.mxu0 %v1595
    %1837 = vmatprep.subr.bf16.mxu0 %v1600
    %1838 = vmatpush1.bf16.msra.mxu0 %v1599
    %1839 = vmatprep.subr.bf16.mxu0 %v1604
    %1840 = vmatpush1.bf16.msra.mxu0 %v1603
    %1841 = vmatprep.subr.bf16.mxu0 %v1608
    %1842 = vmatpush1.bf16.msra.mxu0 %v1607
    %1843 = vmatprep.subr.bf16.mxu0 %v1612
    %1844 = vmatpush1.bf16.msra.mxu0 %v1611
    %1845 = vmatprep.subr.bf16.mxu0 %v1616
    %1846 = vmatpush1.bf16.msra.mxu0 %v1615
    %1847 = vmatprep.subr.bf16.mxu0 %v1620
    %1848 = vmatpush1.bf16.msra.mxu0 %v1619
    %1849 = vmatprep.subr.bf16.mxu0 %v1624
    %1850 = vmatpush1.bf16.msra.mxu0 %v1623
    %1851 = vmatprep.mubr.bf16.mxu0 %v1026
    %1852 = vmatmul.mubr.bf16.gmra.mrb[0].mxu0 %v1025
    %v1853 = vpop.f32.mrb[0].mxu0
    %v1854 = vadd.f32 %v1162, %v1853
    %v1855 = vpop.f32.mrb[0].mxu0
    %v1856 = vadd.f32 %v1166, %v1855
    %v1857 = vpop.f32.mrb[0].mxu0
    %v1858 = vpop.f32.mrb[0].mxu0
    %1859 = vdwg.mxu0
    %1860 = vmatprep.subr.bf16.mxu0 %v1628
    %1861 = vmatpush1.bf16.msra.mxu0 %v1627
    %1862 = vmatprep.subr.bf16.mxu0 %v1632
    %1863 = vmatpush1.bf16.msra.mxu0 %v1631
    %1864 = vmatprep.subr.bf16.mxu0 %v1636
    %1865 = vmatpush1.bf16.msra.mxu0 %v1635
    %1866 = vmatprep.subr.bf16.mxu0 %v1640
    %1867 = vmatpush1.bf16.msra.mxu0 %v1639
    %1868 = vmatprep.subr.bf16.mxu0 %v1644
    %1869 = vmatpush1.bf16.msra.mxu0 %v1643
    %1870 = vmatprep.subr.bf16.mxu0 %v1648
    %1871 = vmatpush1.bf16.msra.mxu0 %v1647
    %1872 = vmatprep.subr.bf16.mxu0 %v1652
    %1873 = vmatpush1.bf16.msra.mxu0 %v1651
    %1874 = vmatprep.subr.bf16.mxu0 %v1656
    %1875 = vmatpush1.bf16.msra.mxu0 %v1655
    %1876 = vmatprep.subr.bf16.mxu0 %v1660
    %1877 = vmatpush1.bf16.msra.mxu0 %v1659
    %1878 = vmatprep.subr.bf16.mxu0 %v1664
    %1879 = vmatpush1.bf16.msra.mxu0 %v1663
    %1880 = vmatprep.subr.bf16.mxu0 %v1668
    %1881 = vmatpush1.bf16.msra.mxu0 %v1667
    %1882 = vmatprep.subr.bf16.mxu0 %v1672
    %1883 = vmatpush1.bf16.msra.mxu0 %v1671
    %1884 = vmatprep.subr.bf16.mxu0 %v1676
    %1885 = vmatpush1.bf16.msra.mxu0 %v1675
    %1886 = vmatprep.subr.bf16.mxu0 %v1680
    %1887 = vmatpush1.bf16.msra.mxu0 %v1679
    %1888 = vmatprep.subr.bf16.mxu0 %v1684
    %1889 = vmatpush1.bf16.msra.mxu0 %v1683
    %1890 = vmatprep.subr.bf16.mxu0 %v1688
    %1891 = vmatpush1.bf16.msra.mxu0 %v1687
    %1892 = vmatprep.mubr.bf16.mxu0 %v1028
    %1893 = vmatmul.mubr.bf16.gmra.mrb[0].mxu0 %v1027
    %v1894 = vpop.f32.mrb[0].mxu0
    %v1895 = vadd.f32 %v1854, %v1894
    %v1896 = vpop.f32.mrb[0].mxu0
    %v1897 = vadd.f32 %v1856, %v1896
    %v1898 = vpop.f32.mrb[0].mxu0
    %v1899 = vpop.f32.mrb[0].mxu0
    %1900 = vdwg.mxu0
    %1901 = vmatprep.subr.bf16.mxu0 %v1566
    %1902 = vmatpush1.bf16.msra.mxu0 %v1565
    %1903 = vmatprep.subr.bf16.mxu0 %v1570
    %1904 = vmatpush1.bf16.msra.mxu0 %v1569
    %1905 = vmatprep.subr.bf16.mxu0 %v1574
    %1906 = vmatpush1.bf16.msra.mxu0 %v1573
    %1907 = vmatprep.subr.bf16.mxu0 %v1578
    %1908 = vmatpush1.bf16.msra.mxu0 %v1577
    %1909 = vmatprep.subr.bf16.mxu0 %v1582
    %1910 = vmatpush1.bf16.msra.mxu0 %v1581
    %1911 = vmatprep.subr.bf16.mxu0 %v1586
    %1912 = vmatpush1.bf16.msra.mxu0 %v1585
    %1913 = vmatprep.subr.bf16.mxu0 %v1590
    %1914 = vmatpush1.bf16.msra.mxu0 %v1589
    %1915 = vmatprep.subr.bf16.mxu0 %v1594
    %1916 = vmatpush1.bf16.msra.mxu0 %v1593
    %1917 = vmatprep.subr.bf16.mxu0 %v1598
    %1918 = vmatpush1.bf16.msra.mxu0 %v1597
    %1919 = vmatprep.subr.bf16.mxu0 %v1602
    %1920 = vmatpush1.bf16.msra.mxu0 %v1601
    %1921 = vmatprep.subr.bf16.mxu0 %v1606
    %1922 = vmatpush1.bf16.msra.mxu0 %v1605
    %1923 = vmatprep.subr.bf16.mxu0 %v1610
    %1924 = vmatpush1.bf16.msra.mxu0 %v1609
    %1925 = vmatprep.subr.bf16.mxu0 %v1614
    %1926 = vmatpush1.bf16.msra.mxu0 %v1613
    %1927 = vmatprep.subr.bf16.mxu0 %v1618
    %1928 = vmatpush1.bf16.msra.mxu0 %v1617
    %1929 = vmatprep.subr.bf16.mxu0 %v1622
    %1930 = vmatpush1.bf16.msra.mxu0 %v1621
    %1931 = vmatprep.subr.bf16.mxu0 %v1626
    %1932 = vmatpush1.bf16.msra.mxu0 %v1625
    %1933 = vmatprep.mubr.bf16.mxu0 %v1026
    %1934 = vmatmul.mubr.bf16.gmra.mrb[0].mxu0 %v1025
    %v1935 = vpop.f32.mrb[0].mxu0
    %v1936 = vadd.f32 %v1170, %v1935
    %v1937 = vpop.f32.mrb[0].mxu0
    %v1938 = vadd.f32 %v1174, %v1937
    %v1939 = vpop.f32.mrb[0].mxu0
    %v1940 = vpop.f32.mrb[0].mxu0
    %1941 = vdwg.mxu0
    %1942 = vmatprep.subr.bf16.mxu0 %v1630
    %1943 = vmatpush1.bf16.msra.mxu0 %v1629
    %1944 = vmatprep.subr.bf16.mxu0 %v1634
    %1945 = vmatpush1.bf16.msra.mxu0 %v1633
    %1946 = vmatprep.subr.bf16.mxu0 %v1638
    %1947 = vmatpush1.bf16.msra.mxu0 %v1637
    %1948 = vmatprep.subr.bf16.mxu0 %v1642
    %1949 = vmatpush1.bf16.msra.mxu0 %v1641
    %1950 = vmatprep.subr.bf16.mxu0 %v1646
    %1951 = vmatpush1.bf16.msra.mxu0 %v1645
    %1952 = vmatprep.subr.bf16.mxu0 %v1650
    %1953 = vmatpush1.bf16.msra.mxu0 %v1649
    %1954 = vmatprep.subr.bf16.mxu0 %v1654
    %1955 = vmatpush1.bf16.msra.mxu0 %v1653
    %1956 = vmatprep.subr.bf16.mxu0 %v1658
    %1957 = vmatpush1.bf16.msra.mxu0 %v1657
    %1958 = vmatprep.subr.bf16.mxu0 %v1662
    %1959 = vmatpush1.bf16.msra.mxu0 %v1661
    %1960 = vmatprep.subr.bf16.mxu0 %v1666
    %1961 = vmatpush1.bf16.msra.mxu0 %v1665
    %1962 = vmatprep.subr.bf16.mxu0 %v1670
    %1963 = vmatpush1.bf16.msra.mxu0 %v1669
    %1964 = vmatprep.subr.bf16.mxu0 %v1674
    %1965 = vmatpush1.bf16.msra.mxu0 %v1673
    %1966 = vmatprep.subr.bf16.mxu0 %v1678
    %1967 = vmatpush1.bf16.msra.mxu0 %v1677
    %1968 = vmatprep.subr.bf16.mxu0 %v1682
    %1969 = vmatpush1.bf16.msra.mxu0 %v1681
    %1970 = vmatprep.subr.bf16.mxu0 %v1686
    %1971 = vmatpush1.bf16.msra.mxu0 %v1685
    %1972 = vmatprep.subr.bf16.mxu0 %v1690
    %1973 = vmatpush1.bf16.msra.mxu0 %v1689
    %1974 = vmatprep.mubr.bf16.mxu0 %v1028
    %1975 = vmatmul.mubr.bf16.gmra.mrb[0].mxu0 %v1027
    %v1976 = vpop.f32.mrb[0].mxu0
    %v1977 = vadd.f32 %v1936, %v1976
    %v1978 = vpop.f32.mrb[0].mxu0
    %v1979 = vadd.f32 %v1938, %v1978
    %v1980 = vpop.f32.mrb[0].mxu0
    %v1981 = vpop.f32.mrb[0].mxu0
    %1982 = vdwg.mxu0
    %v1983 = vmul.f32 %v1895, 0.1
    %v1984 = vmul.f32 %v1897, 0.1
    %v1985 = vmul.f32 %v1977, 0.1
    %v1986 = vmul.f32 %v1979, 0.1
    %v1987 = vld [vmem:[%s1] sm:$0xff]
    %v1988 = vld [vmem:[%s1 + $0x8] sm:$0xff]
    %v1989 = vld [vmem:[%s1 + $0x10] sm:$0xff]
    %v1990 = vld [vmem:[%s1 + $0x18] sm:$0xff]
    %v1991 = vmul.f32 %v1987, 0.1
    %v1992 = vmul.f32 %v1988, 0.1
    %v1993 = vmul.f32 %v1989, 0.1
    %v1994 = vmul.f32 %v1990, 0.1
    %v1995 = vmax.f32 %v1983, %v1984
    %v1996 = vmax.f32 %v1985, %v1986
    %v1997 = vmax.f32 %v1995, %v1996
    %1998 = vmax.xlane.f32.xlu0 %v1997
    %v1999 = vpop.xlane.xlu0 %1998
    %v2000 = vsub.f32 %v1983, %v1999
    %v2001 = vsub.f32 %v1984, %v1999
    %v2002 = vsub.f32 %v1985, %v1999
    %v2003 = vsub.f32 %v1986, %v1999
    %v2004 = vmul.f32 %v2000, 1.442695
    %v2005 = vpow.pop %v2004
    %v2006 = vmul.f32 %v2001, 1.442695
    %v2007 = vpow.pop %v2006
    %v2008 = vmul.f32 %v2002, 1.442695
    %v2009 = vpow.pop %v2008
    %v2010 = vmul.f32 %v2003, 1.442695
    %v2011 = vpow.pop %v2010
    %v2012 = vadd.f32 %v2005, %v2007
    %v2013 = vadd.f32 %v2012, %v2009
    %v2014 = vadd.f32 %v2013, %v2011
    %2015 = vadd.xlane.f32.xlu0 %v2014
    %v2016 = vpop.xlane.xlu0 %2015
    %v2017 = vlog2.pop %v2016
    %v2018 = vmul.f32 %v2017, 0.6931472
    %v2019 = vsub.f32 %v2000, %v2018
    %v2020 = vsub.f32 %v2001, %v2018
    %v2021 = vsub.f32 %v2002, %v2018
    %v2022 = vsub.f32 %v2003, %v2018
    %v2023 = vmax.f32 %v1991, %v1992
    %v2024 = vmax.f32 %v1993, %v1994
    %v2025 = vmax.f32 %v2023, %v2024
    %2026 = vmax.xlane.f32.xlu0 %v2025
    %v2027 = vpop.xlane.xlu0 %2026
    %v2028 = vsub.f32 %v1991, %v2027
    %v2029 = vsub.f32 %v1992, %v2027
    %v2030 = vsub.f32 %v1993, %v2027
    %v2031 = vsub.f32 %v1994, %v2027
    %v2032 = vmul.f32 %v2028, 1.442695
    %v2033 = vpow.pop %v2032
    %v2034 = vmul.f32 %v2029, 1.442695
    %v2035 = vpow.pop %v2034
    %v2036 = vmul.f32 %v2030, 1.442695
    %v2037 = vpow.pop %v2036
    %v2038 = vmul.f32 %v2031, 1.442695
    %v2039 = vpow.pop %v2038
    %v2040 = vadd.f32 %v2033, %v2035
    %v2041 = vadd.f32 %v2040, %v2037
    %v2042 = vadd.f32 %v2041, %v2039
    %2043 = vadd.xlane.f32.xlu0 %v2042
    %v2044 = vpop.xlane.xlu0 %2043
    %v2045 = vlog2.pop %v2044
    %v2046 = vmul.f32 %v2045, 0.6931472
    %v2047 = vsub.f32 %v2028, %v2046
    %v2048 = vsub.f32 %v2029, %v2046
    %v2049 = vsub.f32 %v2030, %v2046
    %v2050 = vsub.f32 %v2031, %v2046
    %v2051 = vmul.f32 %v2047, 1.442695
    %v2052 = vpow.pop %v2051
    %v2053 = vmul.f32 %v2048, 1.442695
    %v2054 = vpow.pop %v2053
    %v2055 = vmul.f32 %v2049, 1.442695
    %v2056 = vpow.pop %v2055
    %v2057 = vmul.f32 %v2050, 1.442695
    %v2058 = vpow.pop %v2057
    %v2059 = vsub.f32 %v2047, %v2019
    %v2060 = vsub.f32 %v2048, %v2020
    %v2061 = vsub.f32 %v2049, %v2021
    %v2062 = vsub.f32 %v2050, %v2022
    %v2063 = vmul.f32 %v2052, %v2059
    %v2064 = vmul.f32 %v2054, %v2060
    %v2065 = vmul.f32 %v2056, %v2061
    %v2066 = vmul.f32 %v2058, %v2062
    %v2067 = vrot.slane %v2063, 4
    %v2068 = vadd.f32 %v2063, %v2067
    %v2069 = vrot.slane %v2068, 2
    %v2070 = vadd.f32 %v2068, %v2069
    %v2071 = vrot.slane %v2070, 1
    %v2072 = vadd.f32 %v2070, %v2071
    %v2073 = vrot.slane %v2064, 4
    %v2074 = vadd.f32 %v2064, %v2073
    %v2075 = vrot.slane %v2074, 2
    %v2076 = vadd.f32 %v2074, %v2075
    %v2077 = vrot.slane %v2076, 1
    %v2078 = vadd.f32 %v2076, %v2077
    %v2079 = vrot.slane %v2065, 4
    %v2080 = vadd.f32 %v2065, %v2079
    %v2081 = vrot.slane %v2080, 2
    %v2082 = vadd.f32 %v2080, %v2081
    %v2083 = vrot.slane %v2082, 1
    %v2084 = vadd.f32 %v2082, %v2083
    %v2085 = vrot.slane %v2066, 4
    %v2086 = vadd.f32 %v2066, %v2085
    %v2087 = vrot.slane %v2086, 2
    %v2088 = vadd.f32 %v2086, %v2087
    %v2089 = vrot.slane %v2088, 1
    %v2090 = vadd.f32 %v2088, %v2089
    %v2095 = vcombine.low %v2072, %v2078
    %v2096 = vcombine.low %v2084, %v2090
    %v2098 = vunpack.c.l.s4 1966171168
    %v2099 = vunpack.c.0.s8 %v2098
    %v2100 = vlaneseq
    %v2101 = vshrl.u32 %v2100, 7
    %v2102 = vsub.s32 %v2099, %v2101
    %v2103 = vrot.slane %v2095, %v2102
    %v2105 = vunpack.c.l.s4 1966171168
    %v2106 = vunpack.c.0.s8 %v2105
    %v2107 = vlaneseq
    %v2108 = vshrl.u32 %v2107, 7
    %v2109 = vsub.s32 %v2106, %v2108
    %v2110 = vrot.slane %v2096, %v2109
    %v2111 = vcombine.low %v2103, %v2110
    %v2113 = vunpack.c.l.s4 1966171168
    %v2114 = vunpack.c.0.s8 %v2113
    %v2115 = vlaneseq
    %v2116 = vshrl.u32 %v2115, 7
    %v2117 = vsub.s32 %v2114, %v2116
    %v2118 = vrot.slane %v2111, %v2117
    %v2120 = vlaneseq
    %vm2121 = vcmp.ge.s32.totalorder %v2120, 0
    %vm2122 = vcmp.lt.s32.totalorder %v2120, 512
    %vm2123 = vmand %vm2121, %vm2122
    %2124 = vst.msk [vmem:[%s6] sm:$0xf] %vm2123, %v2118
    // Predicated region
    $region34: #{_module_kd_loss.1} parent=1 // pred_check
      _
    $region35: #{_module_kd_loss.1} parent=1 // pred_check_branch
      %2126 = sbr.rel (0) target = $region37
    $region36: #{_module_kd_loss.1} parent=1 // pred_region
      _
    $region37: #{_module_kd_loss.1} parent=1 // pred_fallthru
      _
    // Predicated region
    $region38: #{_module_kd_loss.1} parent=1 // pred_check
      _
    $region39: #{_module_kd_loss.1} parent=1 // pred_check_branch
      %2128 = sbr.rel (0) target = $region41
    $region40: #{_module_kd_loss.1} parent=1 // pred_region
      _
    $region41: #{_module_kd_loss.1} parent=1 // pred_fallthru
      _
    %2129 = vsyncpa [#allocation3], 1
    %2130 = vsyncpa [#allocation5], 1

</llo_original>
